<compile_context>
chip_gen: v7x
topology: tpu7x:2x2x1
jax: 0.10.0
libtpu: 0.0.40
codegen_flags: <defaults>
</compile_context>

<pallas_src>
import functools

import numpy as np
import jax
import jax.numpy as jnp
from jax import lax
from jax.experimental import pallas as pl
from jax.experimental.pallas import tpu as pltpu


# ---------------------------------------------------------------------------
# Centered orthonormal DFT matrices (fastmri fft2c / ifft2c as matmuls).
# The inverse centered DFT is the complex conjugate of the forward one, so we
# only build the forward matrix (cached) and negate the imaginary part.
# ---------------------------------------------------------------------------
@functools.lru_cache(maxsize=None)
def _centered_dft_np(n):
    eye = np.eye(n, dtype=np.complex64)
    m = np.fft.fftshift(
        np.fft.fft(np.fft.ifftshift(eye, axes=0), axis=0, norm="ortho"), axes=0)
    return np.real(m).astype(np.float32), np.imag(m).astype(np.float32)


def _dft_operands(h, w, inverse, dt):
    """Left H-size matrix, right (transposed) W-size matrix + Karatsuba sums."""
    hr, hi = _centered_dft_np(h)
    wr, wi = _centered_dft_np(w)
    if inverse:                       # inverse centered DFT == conj(forward)
        hi, wi = -hi, -wi
    wtr, wti = wr.T, wi.T
    mats = (hr, hi, hr + hi, wtr, wti, wtr + wti)
    return tuple(jnp.asarray(m, dtype=dt) for m in mats)


def _compiler_params(vmem_need_bytes, dims):
    # Explicit scoped-VMEM limit: estimated blocks + temporaries + headroom,
    # capped so it stays inside v7x's 64 MiB physical VMEM.
    limit = int(min(max(vmem_need_bytes + (4 << 20), 16 << 20), 56 << 20))
    return pltpu.CompilerParams(dimension_semantics=dims,
                                vmem_limit_bytes=limit)


def _is_bf16(dt):
    return jnp.dtype(dt) == jnp.dtype(jnp.bfloat16)


# ---------------------------------------------------------------------------
# Complex matmuls.  f32 path: Karatsuba (3 matmuls, constant operand's sum
# matrix precomputed on the host).  bf16 path: plain 4-multiply product
# (avoids bf16 rounding of (a+b) and the p3-p1-p2 cancellation; the 4th matmul
# is cheap on v6e/v7x).  preferred_element_type keeps f32 accumulation.
# ---------------------------------------------------------------------------
def _cmm_right(ar, ai, br, bi, bs, dt):
    # (ar + i*ai) @ (br + i*bi), bs = br + bi precomputed (f32 path only).
    if _is_bf16(dt):
        arc, aic = ar.astype(dt), ai.astype(dt)
        rr = (jnp.dot(arc, br, preferred_element_type=jnp.float32)
              - jnp.dot(aic, bi, preferred_element_type=jnp.float32))
        ri = (jnp.dot(arc, bi, preferred_element_type=jnp.float32)
              + jnp.dot(aic, br, preferred_element_type=jnp.float32))
        return rr, ri
    p1 = jnp.dot(ar.astype(dt), br, preferred_element_type=jnp.float32)
    p2 = jnp.dot(ai.astype(dt), bi, preferred_element_type=jnp.float32)
    p3 = jnp.dot((ar + ai).astype(dt), bs, preferred_element_type=jnp.float32)
    return p1 - p2, p3 - p1 - p2


def _cmm_left(br, bi, bs, ar, ai, dt):
    # (br + i*bi) @ (ar + i*ai), bs = br + bi precomputed (f32 path only).
    if _is_bf16(dt):
        arc, aic = ar.astype(dt), ai.astype(dt)
        rr = (jnp.dot(br, arc, preferred_element_type=jnp.float32)
              - jnp.dot(bi, aic, preferred_element_type=jnp.float32))
        ri = (jnp.dot(br, aic, preferred_element_type=jnp.float32)
              + jnp.dot(bi, arc, preferred_element_type=jnp.float32))
        return rr, ri
    p1 = jnp.dot(br, ar.astype(dt), preferred_element_type=jnp.float32)
    p2 = jnp.dot(bi, ai.astype(dt), preferred_element_type=jnp.float32)
    p3 = jnp.dot(bs, (ar + ai).astype(dt), preferred_element_type=jnp.float32)
    return p1 - p2, p3 - p1 - p2


# ---------------------------------------------------------------------------
# Kernel 1: sens_reduce = complex_mul(ifft2c(kspace), sens_conj).sum(coil)
# grid=(B, C); coil axis is a reduction: the (2, H, W) output block stays
# resident in VMEM across coils and is written back once per batch element.
# ---------------------------------------------------------------------------
def _sens_reduce_kernel(kr_ref, ki_ref, scr_ref, sci_ref,
                        ihr_ref, ihi_ref, ihs_ref,
                        iwtr_ref, iwti_ref, iwts_ref, o_ref):
    dt = ihr_ref.dtype
    c = pl.program_id(1)

    @pl.when(c == 0)
    def _():
        o_ref[...] = jnp.zeros_like(o_ref)

    kr = kr_ref[...]                                 # (H, W) f32, this coil
    ki = ki_ref[...]
    # Column iDFT then row iDFT.
    ur, ui = _cmm_right(kr, ki, iwtr_ref[...], iwti_ref[...], iwts_ref[...], dt)
    ir, ii = _cmm_left(ihr_ref[...], ihi_ref[...], ihs_ref[...], ur, ui, dt)
    sr = scr_ref[...]
    si = sci_ref[...]
    o_ref[0] += ir * sr - ii * si
    o_ref[1] += ir * si + ii * sr


def _sens_reduce(kr, ki, scr, sci, dt):
    b, c, h, w = kr.shape
    mats = _dft_operands(h, w, inverse=True, dt=dt)
    coil = pl.BlockSpec((None, None, h, w), lambda i, j: (i, j, 0, 0))
    mat_h = pl.BlockSpec((h, h), lambda i, j: (0, 0),
                         pipeline_mode=pl.Buffered(1))
    mat_w = pl.BlockSpec((w, w), lambda i, j: (0, 0),
                         pipeline_mode=pl.Buffered(1))
    img = h * w * 4
    need = (4 * img * 2                          # per-coil inputs, 2 buffers
            + 2 * img * 2                        # resident (2,H,W) output
            + 3 * (h * h + w * w) * jnp.dtype(dt).itemsize   # DFT mats, 1 buf
            + 12 * img)                          # in-kernel temporaries
    return pl.pallas_call(
        _sens_reduce_kernel,
        out_shape=jax.ShapeDtypeStruct((b, 2, h, w), jnp.float32),
        grid=(b, c),
        in_specs=[coil, coil, coil, coil,
                  mat_h, mat_h, mat_h, mat_w, mat_w, mat_w],
        out_specs=pl.BlockSpec((None, 2, h, w), lambda i, j: (i, 0, 0, 0)),
        compiler_params=_compiler_params(need, ("parallel", "arbitrary")),
    )(kr, ki, scr, sci, *mats)


# ---------------------------------------------------------------------------
# Kernel 2: synthetic i_model -- 3x3 conv built in-kernel: 9 rolled+masked tap
# copies staged into a (9*cin, H*W) VMEM scratch (pltpu.roll -> XLU, no VMEM
# concat copies), ONE MXU matmul with K=9*cin -> ReLU -> 1x1 conv.
# ---------------------------------------------------------------------------
def _imodel_kernel(x_ref, w1_ref, b1_ref, w2_ref, b2_ref, mask_ref, o_ref,
                   col_ref, *, img_w):
    cin, hw = x_ref.shape
    x = x_ref[...]                                  # (cin, H*W), lane-dense
    mk = mask_ref[...]                              # (9, H*W) validity masks
    for t in range(9):                              # taps: static, tiny
        dh, dw = t // 3 - 1, t % 3 - 1
        r = (dh * img_w + dw) % hw                  # shifted[p] = x[(p+r) % HW]
        xs = x if r == 0 else pltpu.roll(x, shift=(hw - r) % hw, axis=1)
        col_ref[t * cin:(t + 1) * cin, :] = xs * mk[t:t + 1, :]
    hid = jnp.maximum(
        jnp.dot(w1_ref[...], col_ref[...],
                preferred_element_type=jnp.float32) + b1_ref[...], 0.0)
    o_ref[...] = (jnp.dot(w2_ref[...], hid, preferred_element_type=jnp.float32)
                  + b2_ref[...])


@functools.lru_cache(maxsize=None)
def _conv_tap_masks(h, w):
    ys, xs = np.divmod(np.arange(h * w), w)
    rows = []
    for t in range(9):
        dh, dw = t // 3 - 1, t % 3 - 1
        ok = (ys + dh >= 0) & (ys + dh < h) & (xs + dw >= 0) & (xs + dw < w)
        rows.append(ok.astype(np.float32))
    return np.stack(rows)


def _i_model(x2d, params, h, w):
    b, cin, hw = x2d.shape
    w1 = params["w1"]                               # (fdim, cin, 3, 3)
    fdim = w1.shape[0]
    # Column t*cin+ci of the folded weight = w1[:, ci, t//3, t%3]; matches the
    # tap slab ordering written into the scratch in-kernel.
    w1_mat = w1.transpose(0, 2, 3, 1).reshape(fdim, 9 * cin)
    b1 = params["b1"].reshape(fdim, 1)
    w2 = params["w2"]
    b2 = params["b2"].reshape(2, 1)
    masks = jnp.asarray(_conv_tap_masks(h, w))
    const1 = dict(pipeline_mode=pl.Buffered(1))
    need = (cin * hw * 4 * 2 + 2 * hw * 4 * 2      # x / out, 2 buffers
            + 9 * hw * 4                           # masks, 1 buffer
            + 9 * cin * hw * 4                     # tap scratch
            + (fdim + cin + 2) * hw * 4 * 2        # temporaries
            + (9 * fdim * cin + 3 * fdim + 4) * 4)
    out = pl.pallas_call(
        functools.partial(_imodel_kernel, img_w=w),
        out_shape=jax.ShapeDtypeStruct((b, 2, hw), jnp.float32),
        grid=(b,),
        in_specs=[pl.BlockSpec((None, cin, hw), lambda i: (i, 0, 0)),
                  pl.BlockSpec((fdim, 9 * cin), lambda i: (0, 0), **const1),
                  pl.BlockSpec((fdim, 1), lambda i: (0, 0), **const1),
                  pl.BlockSpec((2, fdim), lambda i: (0, 0), **const1),
                  pl.BlockSpec((2, 1), lambda i: (0, 0), **const1),
                  pl.BlockSpec((9, hw), lambda i: (0, 0), **const1)],
        out_specs=pl.BlockSpec((None, 2, hw), lambda i: (i, 0, 0)),
        scratch_shapes=[pltpu.VMEM((9 * cin, hw), jnp.float32)],
        compiler_params=_compiler_params(need, ("parallel",)),
    )(x2d, w1_mat, b1, w2, b2, masks)
    return out


# ---------------------------------------------------------------------------
# Kernel 3: sens_expand (complex_mul + fft2c) fused with soft data consistency
#   kspace = where(mask, ref*(1/(1+dc)) + E*(dc/(1+dc)), E)
# grid=(B, C); coil is "parallel" (fully independent per-coil output blocks);
# the small model-term block is re-read every coil step.
# ---------------------------------------------------------------------------
def _sens_expand_dc_kernel(m_ref, smr_ref, smi_ref, rr_ref, ri_ref,
                           fhr_ref, fhi_ref, fhs_ref,
                           fwtr_ref, fwti_ref, fwts_ref,
                           mask_ref, dc_ref, okr_ref, oki_ref):
    dt = fhr_ref.dtype
    mr = m_ref[0]                                   # (H, W) model-term real
    mi = m_ref[1]
    sr = smr_ref[...]                               # (H, W) sens, this coil
    si = smi_ref[...]
    xr = mr * sr - mi * si                          # complex_mul(model, sens)
    xi = mr * si + mi * sr
    vr, vi = _cmm_left(fhr_ref[...], fhi_ref[...], fhs_ref[...], xr, xi, dt)
    er, ei = _cmm_right(vr, vi, fwtr_ref[...], fwti_ref[...], fwts_ref[...], dt)
    inv = dc_ref[0]                                 # 1/(1+dc)  (SMEM scalar)
    wgt = dc_ref[1]                                 # dc/(1+dc)
    keep = mask_ref[...] > 0.5                      # (1, W) broadcasts over rows
    okr_ref[...] = jnp.where(keep, rr_ref[...] * inv + er * wgt, er)
    oki_ref[...] = jnp.where(keep, ri_ref[...] * inv + ei * wgt, ei)


def _sens_expand_dc(model, smr, smi, rr, ri, mask2d, dc2, dt):
    b, c, h, w = smr.shape
    mats = _dft_operands(h, w, inverse=False, dt=dt)
    coil = pl.BlockSpec((None, None, h, w), lambda i, j: (i, j, 0, 0))
    mat_h = pl.BlockSpec((h, h), lambda i, j: (0, 0),
                         pipeline_mode=pl.Buffered(1))
    mat_w = pl.BlockSpec((w, w), lambda i, j: (0, 0),
                         pipeline_mode=pl.Buffered(1))
    img = h * w * 4
    need = (2 * img * 2                           # model term, 2 buffers
            + 4 * img * 2                         # sens + ref, 2 buffers
            + 2 * img * 2                         # outputs, 2 buffers
            + 3 * (h * h + w * w) * jnp.dtype(dt).itemsize  # DFT mats, 1 buf
            + 14 * img)                           # in-kernel temporaries
    return pl.pallas_call(
        _sens_expand_dc_kernel,
        out_shape=(jax.ShapeDtypeStruct((b, c, h, w), jnp.float32),
                   jax.ShapeDtypeStruct((b, c, h, w), jnp.float32)),
        grid=(b, c),
        in_specs=[pl.BlockSpec((None, 2, h, w), lambda i, j: (i, 0, 0, 0)),
                  coil, coil, coil, coil,
                  mat_h, mat_h, mat_h, mat_w, mat_w, mat_w,
                  pl.BlockSpec((1, w), lambda i, j: (0, 0),
                               pipeline_mode=pl.Buffered(1)),
                  pl.BlockSpec(memory_space=pltpu.MemorySpace.SMEM)],
        out_specs=(coil, coil),
        compiler_params=_compiler_params(need, ("parallel", "parallel")),
    )(model, smr, smi, rr, ri, *mats, mask2d, dc2)


# ---------------------------------------------------------------------------
# ImageBlock.forward  (dense=True, variational=False, interconnections=False)
# mxu_dtype=jnp.bfloat16 is the recommended fast path on v6e/v7x.
# ---------------------------------------------------------------------------
def image_block_forward(current_kspace, ref_kspace, mask, sens_maps,
                        sens_conj, concat, params, dense=True,
                        mxu_dtype=jnp.float32):
    b, c, h, w, _ = current_kspace.shape
    if sens_conj is None:
        sens_conj = jnp.stack([sens_maps[..., 0], -sens_maps[..., 1]], axis=-1)

    # Planar real/imag (B, C, H, W): a single strided-slice pass each; no
    # stride-2 complex-interleaved tensors travel between kernels.
    kr = current_kspace[..., 0]
    ki = current_kspace[..., 1]
    scr = sens_conj[..., 0]
    sci = sens_conj[..., 1]

    inp = _sens_reduce(kr, ki, scr, sci, mxu_dtype)               # (B, 2, H, W)

    # NCHW2 interleave only where the module contract needs it (concat output).
    inp_nchw2 = jnp.stack([inp[:, 0], inp[:, 1]], axis=-1)[:, None]
    if concat is None or not dense:
        concat_out = inp_nchw2
        x2d = inp.reshape(b, 2, h * w)
    else:
        concat_out = jnp.concatenate([inp_nchw2, concat], axis=1)
        # Synthetic i_model channel convention: [all reals ..., all imags ...].
        x2d = jnp.concatenate([inp[:, :1], concat[..., 0],
                               inp[:, 1:], concat[..., 1]], axis=1)
        x2d = x2d.reshape(b, x2d.shape[1], h * w)

    model = _i_model(x2d, params, h, w).reshape(b, 2, h, w)       # (B, 2, H, W)

    smr = sens_maps[..., 0]
    smi = sens_maps[..., 1]
    rr = ref_kspace[..., 0]
    ri = ref_kspace[..., 1]
    # TODO(synk): assumes a Cartesian sampling mask varying only along W
    # (standard fastMRI); a fully-general broadcast mask needs per-block plumbing.
    mask2d = mask[0, 0, 0, :, 0].astype(jnp.float32).reshape(1, w)
    dc = params["dc_weight"].reshape(()).astype(jnp.float32)
    dc2 = jnp.stack([1.0 / (1.0 + dc), dc / (1.0 + dc)]).astype(jnp.float32)

    okr, oki = _sens_expand_dc(model, smr, smi, rr, ri, mask2d, dc2, mxu_dtype)
    kspace = jnp.stack([okr, oki], axis=-1)                       # (B,C,H,W,2)
    return kspace, concat_out


# ---------------------------------------------------------------------------
# Pure-JAX reference (independent implementation) for correctness checking.
# ---------------------------------------------------------------------------
def _ref_fft2c(x, inverse=False):
    xc = lax.complex(x[..., 0], x[..., 1])
    xc = jnp.fft.ifftshift(xc, axes=(-2, -1))
    xc = jnp.fft.ifft2(xc, norm="ortho") if inverse else jnp.fft.fft2(xc, norm="ortho")
    xc = jnp.fft.fftshift(xc, axes=(-2, -1))
    return jnp.stack([jnp.real(xc), jnp.imag(xc)], axis=-1).astype(jnp.float32)


def _ref_complex_mul(a, b):
    return jnp.stack([a[..., 0] * b[..., 0] - a[..., 1] * b[..., 1],
                      a[..., 0] * b[..., 1] + a[..., 1] * b[..., 0]], axis=-1)


def image_block_forward_ref(current_kspace, ref_kspace, mask, sens_maps,
                            concat, params):
    sens_conj = jnp.stack([sens_maps[..., 0], -sens_maps[..., 1]], axis=-1)
    img = _ref_fft2c(current_kspace, inverse=True)
    inp = _ref_complex_mul(img, sens_conj).sum(axis=1, keepdims=True)
    concat = jnp.concatenate([inp, concat], axis=1)
    x2d = jnp.concatenate([concat[..., 0], concat[..., 1]], axis=1)
    hid = lax.conv_general_dilated(x2d, params["w1"], (1, 1), "SAME",
                                   dimension_numbers=("NCHW", "OIHW", "NCHW"))
    hid = jnp.maximum(hid + params["b1"][None, :, None, None], 0.0)
    out2 = (jnp.einsum("of,bfhw->bohw", params["w2"], hid)
            + params["b2"][None, :, None, None])
    model_term = out2.transpose(0, 2, 3, 1)[:, None]
    expanded = _ref_fft2c(_ref_complex_mul(model_term, sens_maps), inverse=False)
    dc = params["dc_weight"].reshape(())
    kspace = jnp.where(mask, (ref_kspace + dc * expanded) / (1.0 + dc), expanded)
    return kspace, concat


if __name__ == "__main__":
    key = jax.random.PRNGKey(0)
    B, C, H, W = 2, 4, 16, 16        # batch, coils, spatial
    Ccat_prev = 1                    # channels of previous dense concat
    Fh = 8                           # hidden channels of synthetic i_model
    cin = 2 * (1 + Ccat_prev)

    ks = jax.random.split(key, 8)
    current_kspace = jax.random.normal(ks[0], (B, C, H, W, 2), jnp.float32)
    ref_kspace = jax.random.normal(ks[1], (B, C, H, W, 2), jnp.float32)
    sens_maps = 0.5 * jax.random.normal(ks[2], (B, C, H, W, 2), jnp.float32)
    concat_prev = jax.random.normal(ks[3], (B, Ccat_prev, H, W, 2), jnp.float32)
    cols = jnp.arange(W)
    mask = ((cols % 2 == 0) | ((cols >= W // 2 - 2) & (cols < W // 2 + 2))
            ).reshape(1, 1, 1, W, 1)

    params = {
        "w1": 0.1 * jax.random.normal(ks[4], (Fh, cin, 3, 3), jnp.float32),
        "b1": 0.1 * jax.random.normal(ks[5], (Fh,), jnp.float32),
        "w2": 0.1 * jax.random.normal(ks[6], (2, Fh), jnp.float32),
        "b2": 0.1 * jax.random.normal(ks[7], (2,), jnp.float32),
        "dc_weight": jnp.full((1, 1), 0.01, jnp.float32),   # nn.Parameter([0.01])
    }

    # f32-MXU path: strict check against an independent pure-JAX reference.
    kspace, concat_out = image_block_forward(
        current_kspace, ref_kspace, mask, sens_maps, None, concat_prev, params)
    kspace = jax.block_until_ready(kspace)
    concat_out = jax.block_until_ready(concat_out)

    ks_ref, cc_ref = image_block_forward_ref(
        current_kspace, ref_kspace, mask, sens_maps, concat_prev, params)
    err_k = float(jnp.max(jnp.abs(kspace - ks_ref)))
    err_c = float(jnp.max(jnp.abs(concat_out - cc_ref)))
    assert err_k < 1e-3 and err_c < 1e-3, (err_k, err_c)

    # bf16-MXU fast path (v6e/v7x): 4-mult complex product; loose relative
    # check since the centered-DFT matrices lose mantissa bits in bf16.
    kspace_bf, concat_bf = image_block_forward(
        current_kspace, ref_kspace, mask, sens_maps, None, concat_prev, params,
        mxu_dtype=jnp.bfloat16)
    kspace_bf = jax.block_until_ready(kspace_bf)
    concat_bf = jax.block_until_ready(concat_bf)
    rel_k = float(jnp.max(jnp.abs(kspace_bf - ks_ref)) / jnp.max(jnp.abs(ks_ref)))
    rel_c = float(jnp.max(jnp.abs(concat_bf - cc_ref)) / jnp.max(jnp.abs(cc_ref)))
    assert rel_k < 1e-1 and rel_c < 1e-1, (rel_k, rel_c)

    print("KERNEL_OK")
</pallas_src>

<mosaic_0001>
module attributes {stable_mosaic.version = 11 : i64} {
  func.func @_sens_reduce_kernel(%arg0: i32, %arg1: i32, %arg2: memref<1x1x16x16xf32, #tpu.memory_space<vmem>>, %arg3: memref<1x1x16x16xf32, #tpu.memory_space<vmem>>, %arg4: memref<1x1x16x16xf32, #tpu.memory_space<vmem>>, %arg5: memref<1x1x16x16xf32, #tpu.memory_space<vmem>>, %arg6: memref<16x16xf32, #tpu.memory_space<vmem>>, %arg7: memref<16x16xf32, #tpu.memory_space<vmem>>, %arg8: memref<16x16xf32, #tpu.memory_space<vmem>>, %arg9: memref<16x16xf32, #tpu.memory_space<vmem>>, %arg10: memref<16x16xf32, #tpu.memory_space<vmem>>, %arg11: memref<16x16xf32, #tpu.memory_space<vmem>>, %arg12: memref<1x2x16x16xf32, #tpu.memory_space<vmem>>) attributes {dimension_semantics = [#tpu.dimension_semantics<parallel>, #tpu.dimension_semantics<arbitrary>], iteration_bounds = array<i64: 2, 4>, scalar_prefetch = 0 : i64, scratch_operands = 0 : i64, tpu.core_type = #tpu.core_type<tc>, window_params = [{transform_indices = @transform_0, window_bounds = array<i64: 1, 1, 16, 16>}, {transform_indices = @transform_1, window_bounds = array<i64: 1, 1, 16, 16>}, {transform_indices = @transform_2, window_bounds = array<i64: 1, 1, 16, 16>}, {transform_indices = @transform_3, window_bounds = array<i64: 1, 1, 16, 16>}, {pipeline_mode = #tpu.pipeline_mode<synchronous>, transform_indices = @transform_4, window_bounds = array<i64: 16, 16>}, {pipeline_mode = #tpu.pipeline_mode<synchronous>, transform_indices = @transform_5, window_bounds = array<i64: 16, 16>}, {pipeline_mode = #tpu.pipeline_mode<synchronous>, transform_indices = @transform_6, window_bounds = array<i64: 16, 16>}, {pipeline_mode = #tpu.pipeline_mode<synchronous>, transform_indices = @transform_7, window_bounds = array<i64: 16, 16>}, {pipeline_mode = #tpu.pipeline_mode<synchronous>, transform_indices = @transform_8, window_bounds = array<i64: 16, 16>}, {pipeline_mode = #tpu.pipeline_mode<synchronous>, transform_indices = @transform_9, window_bounds = array<i64: 16, 16>}, {transform_indices = @transform_10, window_bounds = array<i64: 1, 2, 16, 16>}]} {
    %c0_i32 = arith.constant 0 : i32
    %0 = arith.cmpi eq, %arg1, %c0_i32 : i32
    %1 = arith.extui %0 : i1 to i32
    %c0_i32_0 = arith.constant 0 : i32
    %2 = arith.cmpi ne, %1, %c0_i32_0 : i32
    scf.if %2 {
      %cst_48 = arith.constant 0.000000e+00 : f32
      %49 = vector.broadcast %cst_48 : f32 to vector<2x16x16xf32>
      %c0_49 = arith.constant 0 : index
      %c0_50 = arith.constant 0 : index
      %c0_51 = arith.constant 0 : index
      %c0_52 = arith.constant 0 : index
      %50 = vector.load %arg12[%c0_49, %c0_50, %c0_51, %c0_52] : memref<1x2x16x16xf32, #tpu.memory_space<vmem>>, vector<1x2x16x16xf32>
      %51 = vector.shape_cast %50 : vector<1x2x16x16xf32> to vector<2x16x16xf32>
      %52 = vector.shape_cast %49 : vector<2x16x16xf32> to vector<1x2x16x16xf32>
      tpu.vector_store %arg12[%c0_49, %c0_50, %c0_51, %c0_52], %52 {strides = array<i32>} : memref<1x2x16x16xf32, #tpu.memory_space<vmem>>, vector<1x2x16x16xf32>,
    } else {
    }
    %c0 = arith.constant 0 : index
    %c0_1 = arith.constant 0 : index
    %c0_2 = arith.constant 0 : index
    %c0_3 = arith.constant 0 : index
    %3 = vector.load %arg2[%c0, %c0_1, %c0_2, %c0_3] : memref<1x1x16x16xf32, #tpu.memory_space<vmem>>, vector<1x1x16x16xf32>
    %4 = vector.shape_cast %3 : vector<1x1x16x16xf32> to vector<16x16xf32>
    %c0_4 = arith.constant 0 : index
    %c0_5 = arith.constant 0 : index
    %c0_6 = arith.constant 0 : index
    %c0_7 = arith.constant 0 : index
    %5 = vector.load %arg3[%c0_4, %c0_5, %c0_6, %c0_7] : memref<1x1x16x16xf32, #tpu.memory_space<vmem>>, vector<1x1x16x16xf32>
    %6 = vector.shape_cast %5 : vector<1x1x16x16xf32> to vector<16x16xf32>
    %c0_8 = arith.constant 0 : index
    %c0_9 = arith.constant 0 : index
    %7 = vector.load %arg9[%c0_8, %c0_9] : memref<16x16xf32, #tpu.memory_space<vmem>>, vector<16x16xf32>
    %c0_10 = arith.constant 0 : index
    %c0_11 = arith.constant 0 : index
    %8 = vector.load %arg10[%c0_10, %c0_11] : memref<16x16xf32, #tpu.memory_space<vmem>>, vector<16x16xf32>
    %c0_12 = arith.constant 0 : index
    %c0_13 = arith.constant 0 : index
    %9 = vector.load %arg11[%c0_12, %c0_13] : memref<16x16xf32, #tpu.memory_space<vmem>>, vector<16x16xf32>
    %cst = arith.constant dense<0.000000e+00> : vector<16x16xf32>
    %10 = tpu.matmul %4, %7, %cst {dimension_numbers = #tpu.dot_dimension_numbers<[1], [0], [0], [1], [0, 0, 1, 1], [], []>} : vector<16x16xf32>, vector<16x16xf32>, vector<16x16xf32> -> vector<16x16xf32>
    %cst_14 = arith.constant dense<0.000000e+00> : vector<16x16xf32>
    %11 = tpu.matmul %6, %8, %cst_14 {dimension_numbers = #tpu.dot_dimension_numbers<[1], [0], [0], [1], [0, 0, 1, 1], [], []>} : vector<16x16xf32>, vector<16x16xf32>, vector<16x16xf32> -> vector<16x16xf32>
    %12 = arith.addf %4, %6 : vector<16x16xf32>
    %cst_15 = arith.constant dense<0.000000e+00> : vector<16x16xf32>
    %13 = tpu.matmul %12, %9, %cst_15 {dimension_numbers = #tpu.dot_dimension_numbers<[1], [0], [0], [1], [0, 0, 1, 1], [], []>} : vector<16x16xf32>, vector<16x16xf32>, vector<16x16xf32> -> vector<16x16xf32>
    %14 = arith.subf %10, %11 : vector<16x16xf32>
    %15 = arith.subf %13, %10 : vector<16x16xf32>
    %16 = arith.subf %15, %11 : vector<16x16xf32>
    %c0_16 = arith.constant 0 : index
    %c0_17 = arith.constant 0 : index
    %17 = vector.load %arg6[%c0_16, %c0_17] : memref<16x16xf32, #tpu.memory_space<vmem>>, vector<16x16xf32>
    %c0_18 = arith.constant 0 : index
    %c0_19 = arith.constant 0 : index
    %18 = vector.load %arg7[%c0_18, %c0_19] : memref<16x16xf32, #tpu.memory_space<vmem>>, vector<16x16xf32>
    %c0_20 = arith.constant 0 : index
    %c0_21 = arith.constant 0 : index
    %19 = vector.load %arg8[%c0_20, %c0_21] : memref<16x16xf32, #tpu.memory_space<vmem>>, vector<16x16xf32>
    %cst_22 = arith.constant dense<0.000000e+00> : vector<16x16xf32>
    %20 = tpu.matmul %17, %14, %cst_22 {dimension_numbers = #tpu.dot_dimension_numbers<[1], [0], [0], [1], [0, 0, 1, 1], [], []>} : vector<16x16xf32>, vector<16x16xf32>, vector<16x16xf32> -> vector<16x16xf32>
    %cst_23 = arith.constant dense<0.000000e+00> : vector<16x16xf32>
    %21 = tpu.matmul %18, %16, %cst_23 {dimension_numbers = #tpu.dot_dimension_numbers<[1], [0], [0], [1], [0, 0, 1, 1], [], []>} : vector<16x16xf32>, vector<16x16xf32>, vector<16x16xf32> -> vector<16x16xf32>
    %22 = arith.addf %14, %16 : vector<16x16xf32>
    %cst_24 = arith.constant dense<0.000000e+00> : vector<16x16xf32>
    %23 = tpu.matmul %19, %22, %cst_24 {dimension_numbers = #tpu.dot_dimension_numbers<[1], [0], [0], [1], [0, 0, 1, 1], [], []>} : vector<16x16xf32>, vector<16x16xf32>, vector<16x16xf32> -> vector<16x16xf32>
    %24 = arith.subf %20, %21 : vector<16x16xf32>
    %25 = arith.subf %23, %20 : vector<16x16xf32>
    %26 = arith.subf %25, %21 : vector<16x16xf32>
    %c0_25 = arith.constant 0 : index
    %c0_26 = arith.constant 0 : index
    %c0_27 = arith.constant 0 : index
    %c0_28 = arith.constant 0 : index
    %27 = vector.load %arg4[%c0_25, %c0_26, %c0_27, %c0_28] : memref<1x1x16x16xf32, #tpu.memory_space<vmem>>, vector<1x1x16x16xf32>
    %28 = vector.shape_cast %27 : vector<1x1x16x16xf32> to vector<16x16xf32>
    %c0_29 = arith.constant 0 : index
    %c0_30 = arith.constant 0 : index
    %c0_31 = arith.constant 0 : index
    %c0_32 = arith.constant 0 : index
    %29 = vector.load %arg5[%c0_29, %c0_30, %c0_31, %c0_32] : memref<1x1x16x16xf32, #tpu.memory_space<vmem>>, vector<1x1x16x16xf32>
    %30 = vector.shape_cast %29 : vector<1x1x16x16xf32> to vector<16x16xf32>
    %c0_33 = arith.constant 0 : index
    %c0_34 = arith.constant 0 : index
    %c0_35 = arith.constant 0 : index
    %c0_36 = arith.constant 0 : index
    %31 = vector.load %arg12[%c0_33, %c0_34, %c0_35, %c0_36] : memref<1x2x16x16xf32, #tpu.memory_space<vmem>>, vector<1x1x16x16xf32>
    %32 = vector.shape_cast %31 : vector<1x1x16x16xf32> to vector<16x16xf32>
    %33 = arith.mulf %24, %28 : vector<16x16xf32>
    %34 = arith.mulf %26, %30 : vector<16x16xf32>
    %35 = arith.subf %33, %34 : vector<16x16xf32>
    %36 = arith.addf %32, %35 : vector<16x16xf32>
    %c0_37 = arith.constant 0 : index
    %c0_38 = arith.constant 0 : index
    %c0_39 = arith.constant 0 : index
    %c0_40 = arith.constant 0 : index
    %37 = vector.load %arg12[%c0_37, %c0_38, %c0_39, %c0_40] : memref<1x2x16x16xf32, #tpu.memory_space<vmem>>, vector<1x1x16x16xf32>
    %38 = vector.shape_cast %37 : vector<1x1x16x16xf32> to vector<16x16xf32>
    %39 = vector.shape_cast %36 : vector<16x16xf32> to vector<1x1x16x16xf32>
    tpu.vector_store %arg12[%c0_37, %c0_38, %c0_39, %c0_40], %39 {strides = array<i32>} : memref<1x2x16x16xf32, #tpu.memory_space<vmem>>, vector<1x1x16x16xf32>,
    %c0_41 = arith.constant 0 : index
    %c1 = arith.constant 1 : index
    %c0_42 = arith.constant 0 : index
    %c0_43 = arith.constant 0 : index
    %40 = vector.load %arg12[%c0_41, %c1, %c0_42, %c0_43] : memref<1x2x16x16xf32, #tpu.memory_space<vmem>>, vector<1x1x16x16xf32>
    %41 = vector.shape_cast %40 : vector<1x1x16x16xf32> to vector<16x16xf32>
    %42 = arith.mulf %24, %30 : vector<16x16xf32>
    %43 = arith.mulf %26, %28 : vector<16x16xf32>
    %44 = arith.addf %42, %43 : vector<16x16xf32>
    %45 = arith.addf %41, %44 : vector<16x16xf32>
    %c0_44 = arith.constant 0 : index
    %c1_45 = arith.constant 1 : index
    %c0_46 = arith.constant 0 : index
    %c0_47 = arith.constant 0 : index
    %46 = vector.load %arg12[%c0_44, %c1_45, %c0_46, %c0_47] : memref<1x2x16x16xf32, #tpu.memory_space<vmem>>, vector<1x1x16x16xf32>
    %47 = vector.shape_cast %46 : vector<1x1x16x16xf32> to vector<16x16xf32>
    %48 = vector.shape_cast %45 : vector<16x16xf32> to vector<1x1x16x16xf32>
    tpu.vector_store %arg12[%c0_44, %c1_45, %c0_46, %c0_47], %48 {strides = array<i32>} : memref<1x2x16x16xf32, #tpu.memory_space<vmem>>, vector<1x1x16x16xf32>,
    return
  }
  func.func @transform_0(%arg0: i32, %arg1: i32) -> (i32, i32, i32, i32) {
    %c0_i32 = arith.constant 0 : i32
    %c0_i32_0 = arith.constant 0 : i32
    %c0_i32_1 = arith.constant 0 : i32
    return %arg0, %arg1, %c0_i32, %c0_i32_0 : i32, i32, i32, i32
  }
  func.func @transform_1(%arg0: i32, %arg1: i32) -> (i32, i32, i32, i32) {
    %c0_i32 = arith.constant 0 : i32
    %c0_i32_0 = arith.constant 0 : i32
    %c0_i32_1 = arith.constant 0 : i32
    return %arg0, %arg1, %c0_i32, %c0_i32_0 : i32, i32, i32, i32
  }
  func.func @transform_2(%arg0: i32, %arg1: i32) -> (i32, i32, i32, i32) {
    %c0_i32 = arith.constant 0 : i32
    %c0_i32_0 = arith.constant 0 : i32
    %c0_i32_1 = arith.constant 0 : i32
    return %arg0, %arg1, %c0_i32, %c0_i32_0 : i32, i32, i32, i32
  }
  func.func @transform_3(%arg0: i32, %arg1: i32) -> (i32, i32, i32, i32) {
    %c0_i32 = arith.constant 0 : i32
    %c0_i32_0 = arith.constant 0 : i32
    %c0_i32_1 = arith.constant 0 : i32
    return %arg0, %arg1, %c0_i32, %c0_i32_0 : i32, i32, i32, i32
  }
  func.func @transform_4(%arg0: i32, %arg1: i32) -> (i32, i32) {
    %c0_i32 = arith.constant 0 : i32
    %c0_i32_0 = arith.constant 0 : i32
    %c0_i32_1 = arith.constant 0 : i32
    return %c0_i32, %c0_i32_0 : i32, i32
  }
  func.func @transform_5(%arg0: i32, %arg1: i32) -> (i32, i32) {
    %c0_i32 = arith.constant 0 : i32
    %c0_i32_0 = arith.constant 0 : i32
    %c0_i32_1 = arith.constant 0 : i32
    return %c0_i32, %c0_i32_0 : i32, i32
  }
  func.func @transform_6(%arg0: i32, %arg1: i32) -> (i32, i32) {
    %c0_i32 = arith.constant 0 : i32
    %c0_i32_0 = arith.constant 0 : i32
    %c0_i32_1 = arith.constant 0 : i32
    return %c0_i32, %c0_i32_0 : i32, i32
  }
  func.func @transform_7(%arg0: i32, %arg1: i32) -> (i32, i32) {
    %c0_i32 = arith.constant 0 : i32
    %c0_i32_0 = arith.constant 0 : i32
    %c0_i32_1 = arith.constant 0 : i32
    return %c0_i32, %c0_i32_0 : i32, i32
  }
  func.func @transform_8(%arg0: i32, %arg1: i32) -> (i32, i32) {
    %c0_i32 = arith.constant 0 : i32
    %c0_i32_0 = arith.constant 0 : i32
    %c0_i32_1 = arith.constant 0 : i32
    return %c0_i32, %c0_i32_0 : i32, i32
  }
  func.func @transform_9(%arg0: i32, %arg1: i32) -> (i32, i32) {
    %c0_i32 = arith.constant 0 : i32
    %c0_i32_0 = arith.constant 0 : i32
    %c0_i32_1 = arith.constant 0 : i32
    return %c0_i32, %c0_i32_0 : i32, i32
  }
  func.func @transform_10(%arg0: i32, %arg1: i32) -> (i32, i32, i32, i32) {
    %c0_i32 = arith.constant 0 : i32
    %c0_i32_0 = arith.constant 0 : i32
    %c0_i32_1 = arith.constant 0 : i32
    %c0_i32_2 = arith.constant 0 : i32
    return %arg0, %c0_i32, %c0_i32_0, %c0_i32_1 : i32, i32, i32, i32
  }
}

</mosaic_0001>

<llo_original>
// kernel: tpu_custom_call.1
$region0: #{tpu_custom_call.1}
  #allocation0 [shape = 'u32[]', space=smem, size = 0x4, offset = 0x4, fixed_abs, tag = 'smem constant byte address 0x4 - core index']
  #allocation1 [shape = 'u32[144,128]{1,0:T(1,128)}', space=vmem, size = 0x12000, scoped, tag = 'internal scratch']
  %s0 = inlined_call_operand.hbm [shape: f32[2,4,16,16], index: 0, kind: input, shape index: {}]
  %s1 = inlined_call_operand.hbm [shape: f32[2,4,16,16], index: 1, kind: input, shape index: {}]
  %s2 = inlined_call_operand.hbm [shape: f32[2,4,16,16], index: 2, kind: input, shape index: {}]
  %s3 = inlined_call_operand.hbm [shape: f32[2,4,16,16], index: 3, kind: input, shape index: {}]
  %s4 = inlined_call_operand.hbm [shape: f32[16,16], index: 4, kind: input, shape index: {}]
  %s5 = inlined_call_operand.vmem [shape: f32[16,16], index: 5, kind: input, shape index: {}]
  %s6 = inlined_call_operand.hbm [shape: f32[16,16], index: 6, kind: input, shape index: {}]
  %s7 = inlined_call_operand.hbm [shape: f32[16,16], index: 7, kind: input, shape index: {}]
  %s8 = inlined_call_operand.hbm [shape: f32[16,16], index: 8, kind: input, shape index: {}]
  %s9 = inlined_call_operand.vmem [shape: f32[16,16], index: 9, kind: input, shape index: {}]
  %s10 = inlined_call_operand.hbm [shape: f32[2,2,16,16], index: 10, kind: output, shape index: {}]
  %s11 = sld [smem:[#allocation0]]
  $region109: #{tpu_custom_call.1} parent=0
    _
  %s13 = ssub.s32 1, %s11
  %s14 = scalar_select 0, %s13, %s11
  $region1: #{tpu_custom_call.1} parent=0
    #allocation2 [shape = 'u8[16384]{0}', space=vmem, size = 0x4000, scoped, tag = 'input window, operand 0']
    #allocation3 [shape = 's32[2]{0}', space=sflag, size = 0x8, scoped, tag = 'scoped memory for tpu_custom_call.1']
    #allocation4 [shape = 's32[2]{0}', space=sflag, size = 0x8, scoped, tag = 'scoped memory for tpu_custom_call.1']
    #allocation5 [shape = 'u8[16384]{0}', space=vmem, size = 0x4000, scoped, tag = 'input window, operand 1']
    #allocation6 [shape = 's32[2]{0}', space=sflag, size = 0x8, scoped, tag = 'scoped memory for tpu_custom_call.1']
    #allocation7 [shape = 'u8[16384]{0}', space=vmem, size = 0x4000, scoped, tag = 'input window, operand 2']
    #allocation8 [shape = 'u8[16384]{0}', space=vmem, size = 0x4000, scoped, tag = 'input window, operand 3']
    #allocation9 [shape = 's32[2]{0}', space=sflag, size = 0x8, scoped, tag = 'scoped memory for tpu_custom_call.1']
    #allocation10 [shape = 'u8[8192]{0}', space=vmem, size = 0x2000, scoped, tag = 'input window, operand 4, single buffered']
    #allocation11 [shape = 'u8[8192]{0}', space=vmem, size = 0x2000, scoped, tag = 'input window, operand 6, single buffered']
    #allocation12 [shape = 's32[1]{0}', space=sflag, size = 0x4, scoped, tag = 'scoped memory for tpu_custom_call.1']
    #allocation13 [shape = 'u8[8192]{0}', space=vmem, size = 0x2000, scoped, tag = 'input window, operand 7, single buffered']
    #allocation14 [shape = 'u8[8192]{0}', space=vmem, size = 0x2000, scoped, tag = 'input window, operand 8, single buffered']
    #allocation15 [shape = 's32[1]{0}', space=sflag, size = 0x4, scoped, tag = 'scoped memory for tpu_custom_call.1']
    #allocation16 [shape = 'u8[32768]{0}', space=vmem, size = 0x8000, scoped, tag = 'output window, operand 0']
    %15 = vsyncpa [#allocation3], 0
    %s16 = scalar_lea.sflag [#allocation3], 1
    %17 = vsyncpa %s16, 0
    %18 = vsyncpa [#allocation6], 0
    %s19 = scalar_lea.sflag [#allocation6], 1
    %20 = vsyncpa %s19, 0
    %21 = vsyncpa [#allocation9], 0
    %s22 = scalar_lea.sflag [#allocation9], 1
    %23 = vsyncpa %s22, 0
    %24 = vsyncpa [#allocation12], 0
    %25 = vsyncpa [#allocation15], 0
    %26 = vsyncpa [#allocation4], 0
    %s27 = scalar_lea.sflag [#allocation4], 1
    %28 = vsyncpa %s27, 0
    loop: start=0, step=1, limit=10
    $region2: #{tpu_custom_call.1} parent=1 // loop_pre_header
      _
    $region3: #{tpu_custom_call.1} parent=1 // loop_header
      %s30 = sphi 0, %s34
      %p31 = scmp.ge.s32.totalorder %s30, 10
      %s37 = sphi 0, %s49
      %s38 = sphi 0, %s45
      %s39 = sphi 0, %s37
      %s40 = sphi 0, %s38
      %s41 = sphi 0, %s39
      %s42 = sphi 0, %s40
      %s54 = sphi 0, %s56
      %s57 = sphi 0, %s54
      %s58 = sphi 0, %s57
      %s74 = sphi 0, %s58
      %s82 = sphi 0, %s84
      %s85 = sphi 0, %s82
      %s86 = sphi 0, %s85
      %s102 = sphi 0, %s86
      %s110 = sphi 0, %s112
      %s113 = sphi 0, %s110
      %s114 = sphi 0, %s113
      %s130 = sphi 0, %s114
      %s138 = sphi 0, %s140
      %s141 = sphi 0, %s138
      %s142 = sphi 0, %s141
      %s158 = sphi 0, %s142
      %s162 = sphi 0, %s162
      %s164 = sphi 0, %s162
      %s165 = sphi 0, %s164
      %s179 = sphi 0, %s165
      %s183 = sphi 0, %s183
      %s185 = sphi 0, %s183
      %s186 = sphi 0, %s185
      %s200 = sphi 0, %s186
      %s204 = sphi 0, %s204
      %s206 = sphi 0, %s204
      %s207 = sphi 0, %s206
      %s221 = sphi 0, %s207
      %s225 = sphi 0, %s225
      %s227 = sphi 0, %s225
      %s228 = sphi 0, %s227
      %s242 = sphi 0, %s228
      %s246 = sphi 0, %s246
      %s248 = sphi 0, %s246
      %s249 = sphi 0, %s248
      %s263 = sphi 0, %s249
      %s267 = sphi 0, %s267
      %s269 = sphi 0, %s267
      %s270 = sphi 0, %s269
      %s284 = sphi 0, %s270
      %s290 = sphi 0, %s292
      %s293 = sphi 0, %s290
      %s294 = sphi 0, %s293
      %s310 = sphi 0, %s294
    $region4: #{tpu_custom_call.1} parent=1 // loop_header_branch
      %33 = sbr.rel (%p31) target = $region8
    $region5: #{tpu_custom_call.1} parent=1 // loop_body
      %s35 = ssub.s32 %s30, 1
      %s36 = ssub.s32 %s30, 2
      %s43 = sadd.s32 1, %s38
      %p44 = scmp.ge.s32.totalorder %s43, 4
      %s45 = scalar_select %p44, 0, %s43
      %s46 = sadd.s32 1, %s37
      %s47 = scalar_select %p44, %s46, %s37
      %p48 = scmp.ge.s32.totalorder %s47, 2
      %s49 = scalar_select %p48, 0, %s47
      %s50 = ssub.s32 %s37, %s49
      %s51 = ssub.s32 %s38, %s45
      %s52 = sor.u32 %s50, %s51
      %p53 = scmp.eq.s32.totalorder %s52, 0
      %s55 = sadd.s32 %s54, 1
      %s56 = scalar_select %p53, %s54, %s55
      %p59 = pneg %p53
      %p60 = scmp.eq.s32.totalorder %s30, 7
      %p61 = por %p59, %p60
      %p62 = scmp.ne.s32.totalorder %s54, %s57
      %p63 = scmp.eq.s32.totalorder %s30, 0
      %p64 = por %p62, %p63
      %p65 = scmp.ne.s32.totalorder %s54, %s57
      %p66 = scmp.eq.s32.totalorder %s35, 7
      %p67 = por %p65, %p66
      %p68 = scmp.ne.s32.totalorder %s57, %s58
      %p69 = scmp.eq.s32.totalorder %s35, 0
      %p70 = por %p68, %p69
      %p71 = scmp.ne.s32.totalorder %s57, %s58
      %p72 = scmp.eq.s32.totalorder %s36, 7
      %p73 = por %p71, %p72
      %p75 = scmp.ne.s32.totalorder %s58, %s74
      %p76 = scmp.eq.s32.totalorder %s36, 0
      %p77 = por %p75, %p76
      %s78 = ssub.s32 %s37, %s49
      %s79 = ssub.s32 %s38, %s45
      %s80 = sor.u32 %s78, %s79
      %p81 = scmp.eq.s32.totalorder %s80, 0
      %s83 = sadd.s32 %s82, 1
      %s84 = scalar_select %p81, %s82, %s83
      %p87 = pneg %p81
      %p88 = scmp.eq.s32.totalorder %s30, 7
      %p89 = por %p87, %p88
      %p90 = scmp.ne.s32.totalorder %s82, %s85
      %p91 = scmp.eq.s32.totalorder %s30, 0
      %p92 = por %p90, %p91
      %p93 = scmp.ne.s32.totalorder %s82, %s85
      %p94 = scmp.eq.s32.totalorder %s35, 7
      %p95 = por %p93, %p94
      %p96 = scmp.ne.s32.totalorder %s85, %s86
      %p97 = scmp.eq.s32.totalorder %s35, 0
      %p98 = por %p96, %p97
      %p99 = scmp.ne.s32.totalorder %s85, %s86
      %p100 = scmp.eq.s32.totalorder %s36, 7
      %p101 = por %p99, %p100
      %p103 = scmp.ne.s32.totalorder %s86, %s102
      %p104 = scmp.eq.s32.totalorder %s36, 0
      %p105 = por %p103, %p104
      %s106 = ssub.s32 %s37, %s49
      %s107 = ssub.s32 %s38, %s45
      %s108 = sor.u32 %s106, %s107
      %p109 = scmp.eq.s32.totalorder %s108, 0
      %s111 = sadd.s32 %s110, 1
      %s112 = scalar_select %p109, %s110, %s111
      %p115 = pneg %p109
      %p116 = scmp.eq.s32.totalorder %s30, 7
      %p117 = por %p115, %p116
      %p118 = scmp.ne.s32.totalorder %s110, %s113
      %p119 = scmp.eq.s32.totalorder %s30, 0
      %p120 = por %p118, %p119
      %p121 = scmp.ne.s32.totalorder %s110, %s113
      %p122 = scmp.eq.s32.totalorder %s35, 7
      %p123 = por %p121, %p122
      %p124 = scmp.ne.s32.totalorder %s113, %s114
      %p125 = scmp.eq.s32.totalorder %s35, 0
      %p126 = por %p124, %p125
      %p127 = scmp.ne.s32.totalorder %s113, %s114
      %p128 = scmp.eq.s32.totalorder %s36, 7
      %p129 = por %p127, %p128
      %p131 = scmp.ne.s32.totalorder %s114, %s130
      %p132 = scmp.eq.s32.totalorder %s36, 0
      %p133 = por %p131, %p132
      %s134 = ssub.s32 %s37, %s49
      %s135 = ssub.s32 %s38, %s45
      %s136 = sor.u32 %s134, %s135
      %p137 = scmp.eq.s32.totalorder %s136, 0
      %s139 = sadd.s32 %s138, 1
      %s140 = scalar_select %p137, %s138, %s139
      %p143 = pneg %p137
      %p144 = scmp.eq.s32.totalorder %s30, 7
      %p145 = por %p143, %p144
      %p146 = scmp.ne.s32.totalorder %s138, %s141
      %p147 = scmp.eq.s32.totalorder %s30, 0
      %p148 = por %p146, %p147
      %p149 = scmp.ne.s32.totalorder %s138, %s141
      %p150 = scmp.eq.s32.totalorder %s35, 7
      %p151 = por %p149, %p150
      %p152 = scmp.ne.s32.totalorder %s141, %s142
      %p153 = scmp.eq.s32.totalorder %s35, 0
      %p154 = por %p152, %p153
      %p155 = scmp.ne.s32.totalorder %s141, %s142
      %p156 = scmp.eq.s32.totalorder %s36, 7
      %p157 = por %p155, %p156
      %p159 = scmp.ne.s32.totalorder %s142, %s158
      %p160 = scmp.eq.s32.totalorder %s36, 0
      %p161 = por %p159, %p160
      %s163 = sadd.s32 %s162, 1
      %p166 = scmp.eq.s32.totalorder %s30, 7
      %p167 = scmp.ne.s32.totalorder %s162, %s164
      %p168 = scmp.eq.s32.totalorder %s30, 0
      %p169 = por %p167, %p168
      %p170 = scmp.ne.s32.totalorder %s162, %s164
      %p171 = scmp.eq.s32.totalorder %s35, 7
      %p172 = por %p170, %p171
      %p173 = scmp.ne.s32.totalorder %s164, %s165
      %p174 = scmp.eq.s32.totalorder %s35, 0
      %p175 = por %p173, %p174
      %p176 = scmp.ne.s32.totalorder %s164, %s165
      %p177 = scmp.eq.s32.totalorder %s36, 7
      %p178 = por %p176, %p177
      %p180 = scmp.ne.s32.totalorder %s165, %s179
      %p181 = scmp.eq.s32.totalorder %s36, 0
      %p182 = por %p180, %p181
      %s184 = sadd.s32 %s183, 1
      %p187 = scmp.eq.s32.totalorder %s30, 7
      %p188 = scmp.ne.s32.totalorder %s183, %s185
      %p189 = scmp.eq.s32.totalorder %s30, 0
      %p190 = por %p188, %p189
      %p191 = scmp.ne.s32.totalorder %s183, %s185
      %p192 = scmp.eq.s32.totalorder %s35, 7
      %p193 = por %p191, %p192
      %p194 = scmp.ne.s32.totalorder %s185, %s186
      %p195 = scmp.eq.s32.totalorder %s35, 0
      %p196 = por %p194, %p195
      %p197 = scmp.ne.s32.totalorder %s185, %s186
      %p198 = scmp.eq.s32.totalorder %s36, 7
      %p199 = por %p197, %p198
      %p201 = scmp.ne.s32.totalorder %s186, %s200
      %p202 = scmp.eq.s32.totalorder %s36, 0
      %p203 = por %p201, %p202
      %s205 = sadd.s32 %s204, 1
      %p208 = scmp.eq.s32.totalorder %s30, 7
      %p209 = scmp.ne.s32.totalorder %s204, %s206
      %p210 = scmp.eq.s32.totalorder %s30, 0
      %p211 = por %p209, %p210
      %p212 = scmp.ne.s32.totalorder %s204, %s206
      %p213 = scmp.eq.s32.totalorder %s35, 7
      %p214 = por %p212, %p213
      %p215 = scmp.ne.s32.totalorder %s206, %s207
      %p216 = scmp.eq.s32.totalorder %s35, 0
      %p217 = por %p215, %p216
      %p218 = scmp.ne.s32.totalorder %s206, %s207
      %p219 = scmp.eq.s32.totalorder %s36, 7
      %p220 = por %p218, %p219
      %p222 = scmp.ne.s32.totalorder %s207, %s221
      %p223 = scmp.eq.s32.totalorder %s36, 0
      %p224 = por %p222, %p223
      %s226 = sadd.s32 %s225, 1
      %p229 = scmp.eq.s32.totalorder %s30, 7
      %p230 = scmp.ne.s32.totalorder %s225, %s227
      %p231 = scmp.eq.s32.totalorder %s30, 0
      %p232 = por %p230, %p231
      %p233 = scmp.ne.s32.totalorder %s225, %s227
      %p234 = scmp.eq.s32.totalorder %s35, 7
      %p235 = por %p233, %p234
      %p236 = scmp.ne.s32.totalorder %s227, %s228
      %p237 = scmp.eq.s32.totalorder %s35, 0
      %p238 = por %p236, %p237
      %p239 = scmp.ne.s32.totalorder %s227, %s228
      %p240 = scmp.eq.s32.totalorder %s36, 7
      %p241 = por %p239, %p240
      %p243 = scmp.ne.s32.totalorder %s228, %s242
      %p244 = scmp.eq.s32.totalorder %s36, 0
      %p245 = por %p243, %p244
      %s247 = sadd.s32 %s246, 1
      %p250 = scmp.eq.s32.totalorder %s30, 7
      %p251 = scmp.ne.s32.totalorder %s246, %s248
      %p252 = scmp.eq.s32.totalorder %s30, 0
      %p253 = por %p251, %p252
      %p254 = scmp.ne.s32.totalorder %s246, %s248
      %p255 = scmp.eq.s32.totalorder %s35, 7
      %p256 = por %p254, %p255
      %p257 = scmp.ne.s32.totalorder %s248, %s249
      %p258 = scmp.eq.s32.totalorder %s35, 0
      %p259 = por %p257, %p258
      %p260 = scmp.ne.s32.totalorder %s248, %s249
      %p261 = scmp.eq.s32.totalorder %s36, 7
      %p262 = por %p260, %p261
      %p264 = scmp.ne.s32.totalorder %s249, %s263
      %p265 = scmp.eq.s32.totalorder %s36, 0
      %p266 = por %p264, %p265
      %s268 = sadd.s32 %s267, 1
      %p271 = scmp.eq.s32.totalorder %s30, 7
      %p272 = scmp.ne.s32.totalorder %s267, %s269
      %p273 = scmp.eq.s32.totalorder %s30, 0
      %p274 = por %p272, %p273
      %p275 = scmp.ne.s32.totalorder %s267, %s269
      %p276 = scmp.eq.s32.totalorder %s35, 7
      %p277 = por %p275, %p276
      %p278 = scmp.ne.s32.totalorder %s269, %s270
      %p279 = scmp.eq.s32.totalorder %s35, 0
      %p280 = por %p278, %p279
      %p281 = scmp.ne.s32.totalorder %s269, %s270
      %p282 = scmp.eq.s32.totalorder %s36, 7
      %p283 = por %p281, %p282
      %p285 = scmp.ne.s32.totalorder %s270, %s284
      %p286 = scmp.eq.s32.totalorder %s36, 0
      %p287 = por %p285, %p286
      %s288 = ssub.s32 %s37, %s49
      %p289 = scmp.eq.s32.totalorder %s288, 0
      %s291 = sadd.s32 %s290, 1
      %s292 = scalar_select %p289, %s290, %s291
      %p295 = pneg %p289
      %p296 = scmp.eq.s32.totalorder %s30, 7
      %p297 = por %p295, %p296
      %p298 = scmp.ne.s32.totalorder %s290, %s293
      %p299 = scmp.eq.s32.totalorder %s30, 0
      %p300 = por %p298, %p299
      %p301 = scmp.ne.s32.totalorder %s290, %s293
      %p302 = scmp.eq.s32.totalorder %s35, 7
      %p303 = por %p301, %p302
      %p304 = scmp.ne.s32.totalorder %s293, %s294
      %p305 = scmp.eq.s32.totalorder %s35, 0
      %p306 = por %p304, %p305
      %p307 = scmp.ne.s32.totalorder %s293, %s294
      %p308 = scmp.eq.s32.totalorder %s36, 7
      %p309 = por %p307, %p308
      %p311 = scmp.ne.s32.totalorder %s294, %s310
      %p312 = scmp.eq.s32.totalorder %s36, 0
      %p313 = por %p311, %p312
      %p314 = scmp.le.s32.totalorder 1, %s30
      %p315 = scmp.lt.s32.totalorder %s30, 9
      %p316 = pnand %p314, %p315
      %p317 = pneg %p316
      // Predicated region
      $region9: #{tpu_custom_call.1} parent=5 // pred_check
        _
      $region10: #{tpu_custom_call.1} parent=5 // pred_check_branch
        %319 = sbr.rel (%p316) target = $region12
      $region11: #{tpu_custom_call.1} parent=5 // pred_region
        %s320 = ssub.s32 %s30, 1
        // Predicated region
        $region13: #{tpu_custom_call.1} parent=11 // pred_check
          %p321 = pneg %p175
        $region14: #{tpu_custom_call.1} parent=11 // pred_check_branch
          %323 = sbr.rel (%p321) target = $region16
        $region15: #{tpu_custom_call.1} parent=11 // pred_region
          %s325 = ssub.s32 256, 256
          %326 = vsyncadd [#allocation9], %s325
          %s327 = sshll.u32 [#allocation10], 4
          %s328 = int_to_ptr.vmem [resolvable:$true] %s327
          %333 = dma.hbm_to_vmem [thread:$0]  %s4, 256, %s328, [#allocation9], 128, 128, 8
        $region16: #{tpu_custom_call.1} parent=11 // pred_fallthru
          _
        // Predicated region
        $region17: #{tpu_custom_call.1} parent=11 // pred_check
          %p334 = pneg %p196
        $region18: #{tpu_custom_call.1} parent=11 // pred_check_branch
          %336 = sbr.rel (%p334) target = $region20
        $region19: #{tpu_custom_call.1} parent=11 // pred_region
          _
        $region20: #{tpu_custom_call.1} parent=11 // pred_fallthru
          _
        // Predicated region
        $region21: #{tpu_custom_call.1} parent=11 // pred_check
          %p337 = pneg %p217
        $region22: #{tpu_custom_call.1} parent=11 // pred_check_branch
          %339 = sbr.rel (%p337) target = $region24
        $region23: #{tpu_custom_call.1} parent=11 // pred_region
          %s341 = ssub.s32 256, 256
          %342 = vsyncadd [#allocation12], %s341
          %s343 = sshll.u32 [#allocation11], 4
          %s344 = int_to_ptr.vmem [resolvable:$true] %s343
          %349 = dma.hbm_to_vmem [thread:$0]  %s6, 256, %s344, [#allocation12], 128, 128, 8
        $region24: #{tpu_custom_call.1} parent=11 // pred_fallthru
          _
        // Predicated region
        $region25: #{tpu_custom_call.1} parent=11 // pred_check
          %p350 = pneg %p238
        $region26: #{tpu_custom_call.1} parent=11 // pred_check_branch
          %352 = sbr.rel (%p350) target = $region28
        $region27: #{tpu_custom_call.1} parent=11 // pred_region
          %s354 = ssub.s32 256, 256
          %355 = vsyncadd [#allocation12], %s354
          %s356 = sshll.u32 [#allocation13], 4
          %s357 = int_to_ptr.vmem [resolvable:$true] %s356
          %362 = dma.hbm_to_vmem [thread:$0]  %s7, 256, %s357, [#allocation12], 128, 128, 8
        $region28: #{tpu_custom_call.1} parent=11 // pred_fallthru
          _
        // Predicated region
        $region29: #{tpu_custom_call.1} parent=11 // pred_check
          %p363 = pneg %p259
        $region30: #{tpu_custom_call.1} parent=11 // pred_check_branch
          %365 = sbr.rel (%p363) target = $region32
        $region31: #{tpu_custom_call.1} parent=11 // pred_region
          %s367 = ssub.s32 256, 256
          %368 = vsyncadd [#allocation15], %s367
          %s369 = sshll.u32 [#allocation14], 4
          %s370 = int_to_ptr.vmem [resolvable:$true] %s369
          %375 = dma.hbm_to_vmem [thread:$0]  %s8, 256, %s370, [#allocation15], 128, 128, 8
        $region32: #{tpu_custom_call.1} parent=11 // pred_fallthru
          _
        // Predicated region
        $region33: #{tpu_custom_call.1} parent=11 // pred_check
          %p376 = pneg %p280
        $region34: #{tpu_custom_call.1} parent=11 // pred_check_branch
          %378 = sbr.rel (%p376) target = $region36
        $region35: #{tpu_custom_call.1} parent=11 // pred_region
          _
        $region36: #{tpu_custom_call.1} parent=11 // pred_fallthru
          _
      $region12: #{tpu_custom_call.1} parent=5 // pred_fallthru
        _
      %p379 = scmp.lt.s32.totalorder %s30, 8
      // Predicated region
      $region37: #{tpu_custom_call.1} parent=5 // pred_check
        %p380 = pneg %p379
      $region38: #{tpu_custom_call.1} parent=5 // pred_check_branch
        %382 = sbr.rel (%p380) target = $region40
      $region39: #{tpu_custom_call.1} parent=5 // pred_region
        // Predicated region
        $region41: #{tpu_custom_call.1} parent=39 // pred_check
          %p383 = pneg %p64
        $region42: #{tpu_custom_call.1} parent=39 // pred_check_branch
          %385 = sbr.rel (%p383) target = $region44
        $region43: #{tpu_custom_call.1} parent=39 // pred_region
          %s386 = sand.u32 %s54, 1
          %s387 = scalar_lea.sflag [#allocation3], %s386
          %s388 = sand.u32 %s54, 1
          %s389 = smul.addr %s388, 16
          %s390 = scalar_lea.vmem [#allocation2], %s389
          %s392 = ssub.s32 256, 256
          %393 = vsyncadd %s387, %s392
          %s394 = smul.addr %s38, 2
          %s395 = smul.addr %s37, 8
          %s396 = sadd.s32 %s394, %s395
          %s397 = smul.addr %s396, 128
          %s398 = scalar_lea.hbm %s0, %s397
          %s399 = sshll.u32 %s390, 4
          %s400 = int_to_ptr.vmem [resolvable:$true] %s399
          %405 = dma.hbm_to_vmem [thread:$0]  %s398, 256, %s400, %s387, 128, 128, 8
        $region44: #{tpu_custom_call.1} parent=39 // pred_fallthru
          _
        // Predicated region
        $region45: #{tpu_custom_call.1} parent=39 // pred_check
          %p406 = pneg %p92
        $region46: #{tpu_custom_call.1} parent=39 // pred_check_branch
          %408 = sbr.rel (%p406) target = $region48
        $region47: #{tpu_custom_call.1} parent=39 // pred_region
          %s409 = sand.u32 %s30, 1
          %s410 = scalar_lea.sflag [#allocation6], %s409
          %s411 = sand.u32 %s82, 1
          %s412 = smul.addr %s411, 16
          %s413 = scalar_lea.vmem [#allocation5], %s412
          %s415 = ssub.s32 256, 256
          %416 = vsyncadd %s410, %s415
          %s417 = smul.addr %s38, 2
          %s418 = smul.addr %s37, 8
          %s419 = sadd.s32 %s417, %s418
          %s420 = smul.addr %s419, 128
          %s421 = scalar_lea.hbm %s1, %s420
          %s422 = sshll.u32 %s413, 4
          %s423 = int_to_ptr.vmem [resolvable:$true] %s422
          %428 = dma.hbm_to_vmem [thread:$0]  %s421, 256, %s423, %s410, 128, 128, 8
        $region48: #{tpu_custom_call.1} parent=39 // pred_fallthru
          _
        // Predicated region
        $region49: #{tpu_custom_call.1} parent=39 // pred_check
          %p429 = pneg %p120
        $region50: #{tpu_custom_call.1} parent=39 // pred_check_branch
          %431 = sbr.rel (%p429) target = $region52
        $region51: #{tpu_custom_call.1} parent=39 // pred_region
          %s432 = sand.u32 %s30, 1
          %s433 = scalar_lea.sflag [#allocation6], %s432
          %s434 = sand.u32 %s110, 1
          %s435 = smul.addr %s434, 16
          %s436 = scalar_lea.vmem [#allocation7], %s435
          %s438 = ssub.s32 256, 256
          %439 = vsyncadd %s433, %s438
          %s440 = smul.addr %s38, 2
          %s441 = smul.addr %s37, 8
          %s442 = sadd.s32 %s440, %s441
          %s443 = smul.addr %s442, 128
          %s444 = scalar_lea.hbm %s2, %s443
          %s445 = sshll.u32 %s436, 4
          %s446 = int_to_ptr.vmem [resolvable:$true] %s445
          %451 = dma.hbm_to_vmem [thread:$0]  %s444, 256, %s446, %s433, 128, 128, 8
        $region52: #{tpu_custom_call.1} parent=39 // pred_fallthru
          _
        // Predicated region
        $region53: #{tpu_custom_call.1} parent=39 // pred_check
          %p452 = pneg %p148
        $region54: #{tpu_custom_call.1} parent=39 // pred_check_branch
          %454 = sbr.rel (%p452) target = $region56
        $region55: #{tpu_custom_call.1} parent=39 // pred_region
          %s455 = sand.u32 %s30, 1
          %s456 = scalar_lea.sflag [#allocation9], %s455
          %s457 = sand.u32 %s138, 1
          %s458 = smul.addr %s457, 16
          %s459 = scalar_lea.vmem [#allocation8], %s458
          %s461 = ssub.s32 256, 256
          %462 = vsyncadd %s456, %s461
          %s463 = smul.addr %s38, 2
          %s464 = smul.addr %s37, 8
          %s465 = sadd.s32 %s463, %s464
          %s466 = smul.addr %s465, 128
          %s467 = scalar_lea.hbm %s3, %s466
          %s468 = sshll.u32 %s459, 4
          %s469 = int_to_ptr.vmem [resolvable:$true] %s468
          %474 = dma.hbm_to_vmem [thread:$0]  %s467, 256, %s469, %s456, 128, 128, 8
        $region56: #{tpu_custom_call.1} parent=39 // pred_fallthru
          _
      $region40: #{tpu_custom_call.1} parent=5 // pred_fallthru
        _
      %p475 = scmp.le.s32.totalorder 1, %s30
      %p476 = scmp.lt.s32.totalorder %s30, 9
      %p477 = pnand %p475, %p476
      %p478 = pneg %p477
      // Predicated region
      $region57: #{tpu_custom_call.1} parent=5 // pred_check
        _
      $region58: #{tpu_custom_call.1} parent=5 // pred_check_branch
        %480 = sbr.rel (%p477) target = $region60
      $region59: #{tpu_custom_call.1} parent=5 // pred_region
        %s481 = ssub.s32 %s30, 1
        %s482 = sand.u32 %s57, 1
        %s483 = scalar_lea.sflag [#allocation3], %s482
        %s484 = sand.u32 %s57, 1
        %s485 = smul.addr %s484, 16
        %s486 = scalar_lea.vmem [#allocation2], %s485
        // Predicated region
        $region61: #{tpu_custom_call.1} parent=59 // pred_check
          %p487 = pneg %p70
        $region62: #{tpu_custom_call.1} parent=59 // pred_check_branch
          %489 = sbr.rel (%p487) target = $region64
        $region63: #{tpu_custom_call.1} parent=59 // pred_region
          %490 = dma.done %s483, 256
        $region64: #{tpu_custom_call.1} parent=59 // pred_fallthru
          _
        %s491 = sand.u32 %s35, 1
        %s492 = scalar_lea.sflag [#allocation6], %s491
        %s493 = sand.u32 %s85, 1
        %s494 = smul.addr %s493, 16
        %s495 = scalar_lea.vmem [#allocation5], %s494
        // Predicated region
        $region65: #{tpu_custom_call.1} parent=59 // pred_check
          %p496 = pneg %p98
        $region66: #{tpu_custom_call.1} parent=59 // pred_check_branch
          %498 = sbr.rel (%p496) target = $region68
        $region67: #{tpu_custom_call.1} parent=59 // pred_region
          %499 = dma.done %s492, 256
        $region68: #{tpu_custom_call.1} parent=59 // pred_fallthru
          _
        %s500 = sand.u32 %s35, 1
        %s501 = scalar_lea.sflag [#allocation6], %s500
        %s502 = sand.u32 %s113, 1
        %s503 = smul.addr %s502, 16
        %s504 = scalar_lea.vmem [#allocation7], %s503
        // Predicated region
        $region69: #{tpu_custom_call.1} parent=59 // pred_check
          %p505 = pneg %p126
        $region70: #{tpu_custom_call.1} parent=59 // pred_check_branch
          %507 = sbr.rel (%p505) target = $region72
        $region71: #{tpu_custom_call.1} parent=59 // pred_region
          %508 = dma.done %s501, 256
        $region72: #{tpu_custom_call.1} parent=59 // pred_fallthru
          _
        %s509 = sand.u32 %s35, 1
        %s510 = scalar_lea.sflag [#allocation9], %s509
        %s511 = sand.u32 %s141, 1
        %s512 = smul.addr %s511, 16
        %s513 = scalar_lea.vmem [#allocation8], %s512
        // Predicated region
        $region73: #{tpu_custom_call.1} parent=59 // pred_check
          %p514 = pneg %p154
        $region74: #{tpu_custom_call.1} parent=59 // pred_check_branch
          %516 = sbr.rel (%p514) target = $region76
        $region75: #{tpu_custom_call.1} parent=59 // pred_region
          %517 = dma.done %s510, 256
        $region76: #{tpu_custom_call.1} parent=59 // pred_fallthru
          _
        // Predicated region
        $region77: #{tpu_custom_call.1} parent=59 // pred_check
          %p518 = pneg %p175
        $region78: #{tpu_custom_call.1} parent=59 // pred_check_branch
          %520 = sbr.rel (%p518) target = $region80
        $region79: #{tpu_custom_call.1} parent=59 // pred_region
          %521 = dma.done [#allocation9], 256
        $region80: #{tpu_custom_call.1} parent=59 // pred_fallthru
          _
        // Predicated region
        $region81: #{tpu_custom_call.1} parent=59 // pred_check
          %p522 = pneg %p217
        $region82: #{tpu_custom_call.1} parent=59 // pred_check_branch
          %524 = sbr.rel (%p522) target = $region84
        $region83: #{tpu_custom_call.1} parent=59 // pred_region
          %525 = dma.done [#allocation12], 256
        $region84: #{tpu_custom_call.1} parent=59 // pred_fallthru
          _
        // Predicated region
        $region85: #{tpu_custom_call.1} parent=59 // pred_check
          %p526 = pneg %p238
        $region86: #{tpu_custom_call.1} parent=59 // pred_check_branch
          %528 = sbr.rel (%p526) target = $region88
        $region87: #{tpu_custom_call.1} parent=59 // pred_region
          %529 = dma.done [#allocation12], 256
        $region88: #{tpu_custom_call.1} parent=59 // pred_fallthru
          _
        // Predicated region
        $region89: #{tpu_custom_call.1} parent=59 // pred_check
          %p530 = pneg %p259
        $region90: #{tpu_custom_call.1} parent=59 // pred_check_branch
          %532 = sbr.rel (%p530) target = $region92
        $region91: #{tpu_custom_call.1} parent=59 // pred_region
          %533 = dma.done [#allocation15], 256
        $region92: #{tpu_custom_call.1} parent=59 // pred_fallthru
          _
        %s534 = sand.u32 %s57, 1
        %s535 = scalar_lea.sflag [#allocation3], %s534
        %s536 = sand.u32 %s57, 1
        %s537 = smul.addr %s536, 16
        %s538 = scalar_lea.vmem [#allocation2], %s537
        %p539 = pneg %p70
        %p540 = pneg %p67
        %s541 = sand.u32 %s35, 1
        %s542 = scalar_lea.sflag [#allocation6], %s541
        %s543 = sand.u32 %s85, 1
        %s544 = smul.addr %s543, 16
        %s545 = scalar_lea.vmem [#allocation5], %s544
        %p546 = pneg %p98
        %p547 = pneg %p95
        %s548 = sand.u32 %s35, 1
        %s549 = scalar_lea.sflag [#allocation6], %s548
        %s550 = sand.u32 %s113, 1
        %s551 = smul.addr %s550, 16
        %s552 = scalar_lea.vmem [#allocation7], %s551
        %p553 = pneg %p126
        %p554 = pneg %p123
        %s555 = sand.u32 %s35, 1
        %s556 = scalar_lea.sflag [#allocation9], %s555
        %s557 = sand.u32 %s141, 1
        %s558 = smul.addr %s557, 16
        %s559 = scalar_lea.vmem [#allocation8], %s558
        %p560 = pneg %p154
        %p561 = pneg %p151
        %p562 = pneg %p175
        %p563 = pneg %p172
        %p564 = pneg %p196
        %p565 = pneg %p193
        %p566 = pneg %p217
        %p567 = pneg %p214
        %p568 = pneg %p238
        %p569 = pneg %p235
        %p570 = pneg %p259
        %p571 = pneg %p256
        %p572 = pneg %p280
        %p573 = pneg %p277
        %p574 = pneg %p306
        %p575 = pneg %p303
        %s576 = sand.u32 %s293, 1
        %s577 = scalar_lea.sflag [#allocation4], %s576
        %s578 = sand.u32 %s293, 1
        %s579 = smul.addr %s578, 32
        %s580 = scalar_lea.vmem [#allocation16], %s579
        %p581 = scmp.eq.s32.totalorder %s40, 0
        // Predicated region
        $region93: #{tpu_custom_call.1} parent=59 // pred_check
          %p582 = pneg %p581
        $region94: #{tpu_custom_call.1} parent=59 // pred_check_branch
          %584 = sbr.rel (%p582) target = $region96
        $region95: #{tpu_custom_call.1} parent=59 // pred_region
          %vm585 = vcmask 130048
          %586 = vst.msk [vmem:[%s580] sm:$0xff] %vm585, 0.0
          %587 = vst.msk [vmem:[%s580 + $0x8] sm:$0xff] %vm585, 0.0
          %588 = vst.msk [vmem:[%s580 + $0x10] sm:$0xff] %vm585, 0.0
          %589 = vst.msk [vmem:[%s580 + $0x18] sm:$0xff] %vm585, 0.0
        $region96: #{tpu_custom_call.1} parent=59 // pred_fallthru
          _
        %v590 = vld [vmem:[%s486] sm:$0xff]
        %v591 = vld [vmem:[%s486 + $0x8] sm:$0xff]
        %v592 = vld [vmem:[%s495] sm:$0xff]
        %v593 = vld [vmem:[%s495 + $0x8] sm:$0xff]
        %v594 = vld [vmem:[#allocation13] sm:$0xff]
        %v595 = vld [vmem:[#allocation13 + $0x8] sm:$0xff]
        %v596 = vld [vmem:[#allocation14] sm:$0xff]
        %v597 = vld [vmem:[#allocation14 + $0x8] sm:$0xff]
        %v598 = vld [vmem:[%s9] sm:$0xff]
        %v599 = vld [vmem:[%s9 + $0x8] sm:$0xff]
        %vm600 = vcmask 130048
        %v602 = vsel %vm600, %v590, 0
        %v605 = vsel %vm600, %v591, 0
        %607 = vmatprep.subr.mxu0 0.0
        %608 = vmatpush1.msra.mxu0 %v594
        %609 = vmatprep.subr.mxu0 0.0
        %610 = vmatpush1.msra.mxu0 %v595
        %611 = vmatprep.subr.mxu0 0.0
        %612 = vmatpush1.msra.mxu0 0.0
        %613 = vmatprep.subr.mxu0 0.0
        %614 = vmatpush1.msra.mxu0 0.0
        %615 = vmatprep.subr.mxu0 0.0
        %616 = vmatpush1.msra.mxu0 0.0
        %617 = vmatprep.subr.mxu0 0.0
        %618 = vmatpush1.msra.mxu0 0.0
        %619 = vmatprep.subr.mxu0 0.0
        %620 = vmatpush1.msra.mxu0 0.0
        %621 = vmatprep.subr.mxu0 0.0
        %622 = vmatpush1.msra.mxu0 0.0
        %623 = vmatprep.subr.mxu0 0.0
        %624 = vmatpush1.msra.mxu0 0.0
        %625 = vmatprep.subr.mxu0 0.0
        %626 = vmatpush1.msra.mxu0 0.0
        %627 = vmatprep.subr.mxu0 0.0
        %628 = vmatpush1.msra.mxu0 0.0
        %629 = vmatprep.subr.mxu0 0.0
        %630 = vmatpush1.msra.mxu0 0.0
        %631 = vmatprep.subr.mxu0 0.0
        %632 = vmatpush1.msra.mxu0 0.0
        %633 = vmatprep.subr.mxu0 0.0
        %634 = vmatpush1.msra.mxu0 0.0
        %635 = vmatprep.subr.mxu0 0.0
        %636 = vmatpush1.msra.mxu0 0.0
        %637 = vmatprep.subr.mxu0 0.0
        %638 = vmatpush1.msra.mxu0 0.0
        %639 = vmatprep.subr.mxu0 0.0
        %640 = vmatpush1.msra.mxu0 0.0
        %641 = vmatprep.subr.mxu0 0.0
        %642 = vmatpush1.msra.mxu0 0.0
        %643 = vmatprep.subr.mxu0 0.0
        %644 = vmatpush1.msra.mxu0 0.0
        %645 = vmatprep.subr.mxu0 0.0
        %646 = vmatpush1.msra.mxu0 0.0
        %647 = vmatprep.subr.mxu0 0.0
        %648 = vmatpush1.msra.mxu0 0.0
        %649 = vmatprep.subr.mxu0 0.0
        %650 = vmatpush1.msra.mxu0 0.0
        %651 = vmatprep.subr.mxu0 0.0
        %652 = vmatpush1.msra.mxu0 0.0
        %653 = vmatprep.subr.mxu0 0.0
        %654 = vmatpush1.msra.mxu0 0.0
        %655 = vmatprep.subr.mxu0 0.0
        %656 = vmatpush1.msra.mxu0 0.0
        %657 = vmatprep.subr.mxu0 0.0
        %658 = vmatpush1.msra.mxu0 0.0
        %659 = vmatprep.subr.mxu0 0.0
        %660 = vmatpush1.msra.mxu0 0.0
        %661 = vmatprep.subr.mxu0 0.0
        %662 = vmatpush1.msra.mxu0 0.0
        %663 = vmatprep.subr.mxu0 0.0
        %664 = vmatpush1.msra.mxu0 0.0
        %665 = vmatprep.subr.mxu0 0.0
        %666 = vmatpush1.msra.mxu0 0.0
        %667 = vmatprep.subr.mxu0 0.0
        %668 = vmatpush1.msra.mxu0 0.0
        %669 = vmatprep.subr.mxu0 0.0
        %670 = vmatpush1.msra.mxu0 0.0
        %671 = vmatprep.mubr.f32.mxu0 0.0
        %672 = vmatmul.mubr.f32.gmra.mrb[0].mxu0 %v602
        %v673 = vpop.f32.mrb[0].mxu0
        %v674 = vadd.f32 0.0, %v673
        %v675 = vpop.f32.mrb[0].mxu0
        %676 = vmatprep.mubr.f32.mxu0 0.0
        %677 = vmatmul.mubr.f32.gmra.mrb[0].mxu0 %v605
        %v678 = vpop.f32.mrb[0].mxu0
        %v679 = vadd.f32 0.0, %v678
        %v680 = vpop.f32.mrb[0].mxu0
        %681 = vdwg.mxu0
        %v683 = vsel %vm600, %v592, 0
        %v686 = vsel %vm600, %v593, 0
        %688 = vmatprep.subr.mxu0 0.0
        %689 = vmatpush1.msra.mxu0 %v596
        %690 = vmatprep.subr.mxu0 0.0
        %691 = vmatpush1.msra.mxu0 %v597
        %692 = vmatprep.subr.mxu0 0.0
        %693 = vmatpush1.msra.mxu0 0.0
        %694 = vmatprep.subr.mxu0 0.0
        %695 = vmatpush1.msra.mxu0 0.0
        %696 = vmatprep.subr.mxu0 0.0
        %697 = vmatpush1.msra.mxu0 0.0
        %698 = vmatprep.subr.mxu0 0.0
        %699 = vmatpush1.msra.mxu0 0.0
        %700 = vmatprep.subr.mxu0 0.0
        %701 = vmatpush1.msra.mxu0 0.0
        %702 = vmatprep.subr.mxu0 0.0
        %703 = vmatpush1.msra.mxu0 0.0
        %704 = vmatprep.subr.mxu0 0.0
        %705 = vmatpush1.msra.mxu0 0.0
        %706 = vmatprep.subr.mxu0 0.0
        %707 = vmatpush1.msra.mxu0 0.0
        %708 = vmatprep.subr.mxu0 0.0
        %709 = vmatpush1.msra.mxu0 0.0
        %710 = vmatprep.subr.mxu0 0.0
        %711 = vmatpush1.msra.mxu0 0.0
        %712 = vmatprep.subr.mxu0 0.0
        %713 = vmatpush1.msra.mxu0 0.0
        %714 = vmatprep.subr.mxu0 0.0
        %715 = vmatpush1.msra.mxu0 0.0
        %716 = vmatprep.subr.mxu0 0.0
        %717 = vmatpush1.msra.mxu0 0.0
        %718 = vmatprep.subr.mxu0 0.0
        %719 = vmatpush1.msra.mxu0 0.0
        %720 = vmatprep.subr.mxu0 0.0
        %721 = vmatpush1.msra.mxu0 0.0
        %722 = vmatprep.subr.mxu0 0.0
        %723 = vmatpush1.msra.mxu0 0.0
        %724 = vmatprep.subr.mxu0 0.0
        %725 = vmatpush1.msra.mxu0 0.0
        %726 = vmatprep.subr.mxu0 0.0
        %727 = vmatpush1.msra.mxu0 0.0
        %728 = vmatprep.subr.mxu0 0.0
        %729 = vmatpush1.msra.mxu0 0.0
        %730 = vmatprep.subr.mxu0 0.0
        %731 = vmatpush1.msra.mxu0 0.0
        %732 = vmatprep.subr.mxu0 0.0
        %733 = vmatpush1.msra.mxu0 0.0
        %734 = vmatprep.subr.mxu0 0.0
        %735 = vmatpush1.msra.mxu0 0.0
        %736 = vmatprep.subr.mxu0 0.0
        %737 = vmatpush1.msra.mxu0 0.0
        %738 = vmatprep.subr.mxu0 0.0
        %739 = vmatpush1.msra.mxu0 0.0
        %740 = vmatprep.subr.mxu0 0.0
        %741 = vmatpush1.msra.mxu0 0.0
        %742 = vmatprep.subr.mxu0 0.0
        %743 = vmatpush1.msra.mxu0 0.0
        %744 = vmatprep.subr.mxu0 0.0
        %745 = vmatpush1.msra.mxu0 0.0
        %746 = vmatprep.subr.mxu0 0.0
        %747 = vmatpush1.msra.mxu0 0.0
        %748 = vmatprep.subr.mxu0 0.0
        %749 = vmatpush1.msra.mxu0 0.0
        %750 = vmatprep.subr.mxu0 0.0
        %751 = vmatpush1.msra.mxu0 0.0
        %752 = vmatprep.mubr.f32.mxu0 0.0
        %753 = vmatmul.mubr.f32.gmra.mrb[0].mxu0 %v683
        %v754 = vpop.f32.mrb[0].mxu0
        %v755 = vadd.f32 0.0, %v754
        %v756 = vpop.f32.mrb[0].mxu0
        %757 = vmatprep.mubr.f32.mxu0 0.0
        %758 = vmatmul.mubr.f32.gmra.mrb[0].mxu0 %v686
        %v759 = vpop.f32.mrb[0].mxu0
        %v760 = vadd.f32 0.0, %v759
        %v761 = vpop.f32.mrb[0].mxu0
        %762 = vdwg.mxu0
        %v763 = vadd.f32 %v590, %v592
        %v764 = vadd.f32 %v591, %v593
        %v766 = vsel %vm600, %v763, 0
        %v769 = vsel %vm600, %v764, 0
        %771 = vmatprep.subr.mxu0 0.0
        %772 = vmatpush1.msra.mxu0 %v598
        %773 = vmatprep.subr.mxu0 0.0
        %774 = vmatpush1.msra.mxu0 %v599
        %775 = vmatprep.subr.mxu0 0.0
        %776 = vmatpush1.msra.mxu0 0.0
        %777 = vmatprep.subr.mxu0 0.0
        %778 = vmatpush1.msra.mxu0 0.0
        %779 = vmatprep.subr.mxu0 0.0
        %780 = vmatpush1.msra.mxu0 0.0
        %781 = vmatprep.subr.mxu0 0.0
        %782 = vmatpush1.msra.mxu0 0.0
        %783 = vmatprep.subr.mxu0 0.0
        %784 = vmatpush1.msra.mxu0 0.0
        %785 = vmatprep.subr.mxu0 0.0
        %786 = vmatpush1.msra.mxu0 0.0
        %787 = vmatprep.subr.mxu0 0.0
        %788 = vmatpush1.msra.mxu0 0.0
        %789 = vmatprep.subr.mxu0 0.0
        %790 = vmatpush1.msra.mxu0 0.0
        %791 = vmatprep.subr.mxu0 0.0
        %792 = vmatpush1.msra.mxu0 0.0
        %793 = vmatprep.subr.mxu0 0.0
        %794 = vmatpush1.msra.mxu0 0.0
        %795 = vmatprep.subr.mxu0 0.0
        %796 = vmatpush1.msra.mxu0 0.0
        %797 = vmatprep.subr.mxu0 0.0
        %798 = vmatpush1.msra.mxu0 0.0
        %799 = vmatprep.subr.mxu0 0.0
        %800 = vmatpush1.msra.mxu0 0.0
        %801 = vmatprep.subr.mxu0 0.0
        %802 = vmatpush1.msra.mxu0 0.0
        %803 = vmatprep.subr.mxu0 0.0
        %804 = vmatpush1.msra.mxu0 0.0
        %805 = vmatprep.subr.mxu0 0.0
        %806 = vmatpush1.msra.mxu0 0.0
        %807 = vmatprep.subr.mxu0 0.0
        %808 = vmatpush1.msra.mxu0 0.0
        %809 = vmatprep.subr.mxu0 0.0
        %810 = vmatpush1.msra.mxu0 0.0
        %811 = vmatprep.subr.mxu0 0.0
        %812 = vmatpush1.msra.mxu0 0.0
        %813 = vmatprep.subr.mxu0 0.0
        %814 = vmatpush1.msra.mxu0 0.0
        %815 = vmatprep.subr.mxu0 0.0
        %816 = vmatpush1.msra.mxu0 0.0
        %817 = vmatprep.subr.mxu0 0.0
        %818 = vmatpush1.msra.mxu0 0.0
        %819 = vmatprep.subr.mxu0 0.0
        %820 = vmatpush1.msra.mxu0 0.0
        %821 = vmatprep.subr.mxu0 0.0
        %822 = vmatpush1.msra.mxu0 0.0
        %823 = vmatprep.subr.mxu0 0.0
        %824 = vmatpush1.msra.mxu0 0.0
        %825 = vmatprep.subr.mxu0 0.0
        %826 = vmatpush1.msra.mxu0 0.0
        %827 = vmatprep.subr.mxu0 0.0
        %828 = vmatpush1.msra.mxu0 0.0
        %829 = vmatprep.subr.mxu0 0.0
        %830 = vmatpush1.msra.mxu0 0.0
        %831 = vmatprep.subr.mxu0 0.0
        %832 = vmatpush1.msra.mxu0 0.0
        %833 = vmatprep.subr.mxu0 0.0
        %834 = vmatpush1.msra.mxu0 0.0
        %835 = vmatprep.mubr.f32.mxu0 0.0
        %836 = vmatmul.mubr.f32.gmra.mrb[0].mxu0 %v766
        %v837 = vpop.f32.mrb[0].mxu0
        %v838 = vadd.f32 0.0, %v837
        %v839 = vpop.f32.mrb[0].mxu0
        %840 = vmatprep.mubr.f32.mxu0 0.0
        %841 = vmatmul.mubr.f32.gmra.mrb[0].mxu0 %v769
        %v842 = vpop.f32.mrb[0].mxu0
        %v843 = vadd.f32 0.0, %v842
        %v844 = vpop.f32.mrb[0].mxu0
        %845 = vdwg.mxu0
        %v846 = vsub.f32 %v674, %v755
        %v847 = vsub.f32 %v679, %v760
        %v848 = vsub.f32 %v838, %v674
        %v849 = vsub.f32 %v843, %v679
        %v850 = vsub.f32 %v848, %v755
        %v851 = vsub.f32 %v849, %v760
        %v852 = vld [vmem:[#allocation10] sm:$0xff]
        %v853 = vld [vmem:[#allocation10 + $0x8] sm:$0xff]
        %v854 = vld [vmem:[%s5] sm:$0xff]
        %v855 = vld [vmem:[%s5 + $0x8] sm:$0xff]
        %v856 = vld [vmem:[#allocation11] sm:$0xff]
        %v857 = vld [vmem:[#allocation11 + $0x8] sm:$0xff]
        %v859 = vsel %vm600, %v852, 0
        %v862 = vsel %vm600, %v853, 0
        %864 = vmatprep.subr.mxu0 0.0
        %865 = vmatpush1.msra.mxu0 %v846
        %866 = vmatprep.subr.mxu0 0.0
        %867 = vmatpush1.msra.mxu0 %v847
        %868 = vmatprep.subr.mxu0 0.0
        %869 = vmatpush1.msra.mxu0 0.0
        %870 = vmatprep.subr.mxu0 0.0
        %871 = vmatpush1.msra.mxu0 0.0
        %872 = vmatprep.subr.mxu0 0.0
        %873 = vmatpush1.msra.mxu0 0.0
        %874 = vmatprep.subr.mxu0 0.0
        %875 = vmatpush1.msra.mxu0 0.0
        %876 = vmatprep.subr.mxu0 0.0
        %877 = vmatpush1.msra.mxu0 0.0
        %878 = vmatprep.subr.mxu0 0.0
        %879 = vmatpush1.msra.mxu0 0.0
        %880 = vmatprep.subr.mxu0 0.0
        %881 = vmatpush1.msra.mxu0 0.0
        %882 = vmatprep.subr.mxu0 0.0
        %883 = vmatpush1.msra.mxu0 0.0
        %884 = vmatprep.subr.mxu0 0.0
        %885 = vmatpush1.msra.mxu0 0.0
        %886 = vmatprep.subr.mxu0 0.0
        %887 = vmatpush1.msra.mxu0 0.0
        %888 = vmatprep.subr.mxu0 0.0
        %889 = vmatpush1.msra.mxu0 0.0
        %890 = vmatprep.subr.mxu0 0.0
        %891 = vmatpush1.msra.mxu0 0.0
        %892 = vmatprep.subr.mxu0 0.0
        %893 = vmatpush1.msra.mxu0 0.0
        %894 = vmatprep.subr.mxu0 0.0
        %895 = vmatpush1.msra.mxu0 0.0
        %896 = vmatprep.subr.mxu0 0.0
        %897 = vmatpush1.msra.mxu0 0.0
        %898 = vmatprep.subr.mxu0 0.0
        %899 = vmatpush1.msra.mxu0 0.0
        %900 = vmatprep.subr.mxu0 0.0
        %901 = vmatpush1.msra.mxu0 0.0
        %902 = vmatprep.subr.mxu0 0.0
        %903 = vmatpush1.msra.mxu0 0.0
        %904 = vmatprep.subr.mxu0 0.0
        %905 = vmatpush1.msra.mxu0 0.0
        %906 = vmatprep.subr.mxu0 0.0
        %907 = vmatpush1.msra.mxu0 0.0
        %908 = vmatprep.subr.mxu0 0.0
        %909 = vmatpush1.msra.mxu0 0.0
        %910 = vmatprep.subr.mxu0 0.0
        %911 = vmatpush1.msra.mxu0 0.0
        %912 = vmatprep.subr.mxu0 0.0
        %913 = vmatpush1.msra.mxu0 0.0
        %914 = vmatprep.subr.mxu0 0.0
        %915 = vmatpush1.msra.mxu0 0.0
        %916 = vmatprep.subr.mxu0 0.0
        %917 = vmatpush1.msra.mxu0 0.0
        %918 = vmatprep.subr.mxu0 0.0
        %919 = vmatpush1.msra.mxu0 0.0
        %920 = vmatprep.subr.mxu0 0.0
        %921 = vmatpush1.msra.mxu0 0.0
        %922 = vmatprep.subr.mxu0 0.0
        %923 = vmatpush1.msra.mxu0 0.0
        %924 = vmatprep.subr.mxu0 0.0
        %925 = vmatpush1.msra.mxu0 0.0
        %926 = vmatprep.subr.mxu0 0.0
        %927 = vmatpush1.msra.mxu0 0.0
        %928 = vmatprep.mubr.f32.mxu0 0.0
        %929 = vmatmul.mubr.f32.gmra.mrb[0].mxu0 %v859
        %v930 = vpop.f32.mrb[0].mxu0
        %v931 = vadd.f32 0.0, %v930
        %v932 = vpop.f32.mrb[0].mxu0
        %933 = vmatprep.mubr.f32.mxu0 0.0
        %934 = vmatmul.mubr.f32.gmra.mrb[0].mxu0 %v862
        %v935 = vpop.f32.mrb[0].mxu0
        %v936 = vadd.f32 0.0, %v935
        %v937 = vpop.f32.mrb[0].mxu0
        %938 = vdwg.mxu0
        %v940 = vsel %vm600, %v854, 0
        %v943 = vsel %vm600, %v855, 0
        %945 = vmatprep.subr.mxu0 0.0
        %946 = vmatpush1.msra.mxu0 %v850
        %947 = vmatprep.subr.mxu0 0.0
        %948 = vmatpush1.msra.mxu0 %v851
        %949 = vmatprep.subr.mxu0 0.0
        %950 = vmatpush1.msra.mxu0 0.0
        %951 = vmatprep.subr.mxu0 0.0
        %952 = vmatpush1.msra.mxu0 0.0
        %953 = vmatprep.subr.mxu0 0.0
        %954 = vmatpush1.msra.mxu0 0.0
        %955 = vmatprep.subr.mxu0 0.0
        %956 = vmatpush1.msra.mxu0 0.0
        %957 = vmatprep.subr.mxu0 0.0
        %958 = vmatpush1.msra.mxu0 0.0
        %959 = vmatprep.subr.mxu0 0.0
        %960 = vmatpush1.msra.mxu0 0.0
        %961 = vmatprep.subr.mxu0 0.0
        %962 = vmatpush1.msra.mxu0 0.0
        %963 = vmatprep.subr.mxu0 0.0
        %964 = vmatpush1.msra.mxu0 0.0
        %965 = vmatprep.subr.mxu0 0.0
        %966 = vmatpush1.msra.mxu0 0.0
        %967 = vmatprep.subr.mxu0 0.0
        %968 = vmatpush1.msra.mxu0 0.0
        %969 = vmatprep.subr.mxu0 0.0
        %970 = vmatpush1.msra.mxu0 0.0
        %971 = vmatprep.subr.mxu0 0.0
        %972 = vmatpush1.msra.mxu0 0.0
        %973 = vmatprep.subr.mxu0 0.0
        %974 = vmatpush1.msra.mxu0 0.0
        %975 = vmatprep.subr.mxu0 0.0
        %976 = vmatpush1.msra.mxu0 0.0
        %977 = vmatprep.subr.mxu0 0.0
        %978 = vmatpush1.msra.mxu0 0.0
        %979 = vmatprep.subr.mxu0 0.0
        %980 = vmatpush1.msra.mxu0 0.0
        %981 = vmatprep.subr.mxu0 0.0
        %982 = vmatpush1.msra.mxu0 0.0
        %983 = vmatprep.subr.mxu0 0.0
        %984 = vmatpush1.msra.mxu0 0.0
        %985 = vmatprep.subr.mxu0 0.0
        %986 = vmatpush1.msra.mxu0 0.0
        %987 = vmatprep.subr.mxu0 0.0
        %988 = vmatpush1.msra.mxu0 0.0
        %989 = vmatprep.subr.mxu0 0.0
        %990 = vmatpush1.msra.mxu0 0.0
        %991 = vmatprep.subr.mxu0 0.0
        %992 = vmatpush1.msra.mxu0 0.0
        %993 = vmatprep.subr.mxu0 0.0
        %994 = vmatpush1.msra.mxu0 0.0
        %995 = vmatprep.subr.mxu0 0.0
        %996 = vmatpush1.msra.mxu0 0.0
        %997 = vmatprep.subr.mxu0 0.0
        %998 = vmatpush1.msra.mxu0 0.0
        %999 = vmatprep.subr.mxu0 0.0
        %1000 = vmatpush1.msra.mxu0 0.0
        %1001 = vmatprep.subr.mxu0 0.0
        %1002 = vmatpush1.msra.mxu0 0.0
        %1003 = vmatprep.subr.mxu0 0.0
        %1004 = vmatpush1.msra.mxu0 0.0
        %1005 = vmatprep.subr.mxu0 0.0
        %1006 = vmatpush1.msra.mxu0 0.0
        %1007 = vmatprep.subr.mxu0 0.0
        %1008 = vmatpush1.msra.mxu0 0.0
        %1009 = vmatprep.mubr.f32.mxu0 0.0
        %1010 = vmatmul.mubr.f32.gmra.mrb[0].mxu0 %v940
        %v1011 = vpop.f32.mrb[0].mxu0
        %v1012 = vadd.f32 0.0, %v1011
        %v1013 = vpop.f32.mrb[0].mxu0
        %1014 = vmatprep.mubr.f32.mxu0 0.0
        %1015 = vmatmul.mubr.f32.gmra.mrb[0].mxu0 %v943
        %v1016 = vpop.f32.mrb[0].mxu0
        %v1017 = vadd.f32 0.0, %v1016
        %v1018 = vpop.f32.mrb[0].mxu0
        %1019 = vdwg.mxu0
        %v1020 = vadd.f32 %v846, %v850
        %v1021 = vadd.f32 %v847, %v851
        %v1023 = vsel %vm600, %v856, 0
        %v1026 = vsel %vm600, %v857, 0
        %1028 = vmatprep.subr.mxu0 0.0
        %1029 = vmatpush1.msra.mxu0 %v1020
        %1030 = vmatprep.subr.mxu0 0.0
        %1031 = vmatpush1.msra.mxu0 %v1021
        %1032 = vmatprep.subr.mxu0 0.0
        %1033 = vmatpush1.msra.mxu0 0.0
        %1034 = vmatprep.subr.mxu0 0.0
        %1035 = vmatpush1.msra.mxu0 0.0
        %1036 = vmatprep.subr.mxu0 0.0
        %1037 = vmatpush1.msra.mxu0 0.0
        %1038 = vmatprep.subr.mxu0 0.0
        %1039 = vmatpush1.msra.mxu0 0.0
        %1040 = vmatprep.subr.mxu0 0.0
        %1041 = vmatpush1.msra.mxu0 0.0
        %1042 = vmatprep.subr.mxu0 0.0
        %1043 = vmatpush1.msra.mxu0 0.0
        %1044 = vmatprep.subr.mxu0 0.0
        %1045 = vmatpush1.msra.mxu0 0.0
        %1046 = vmatprep.subr.mxu0 0.0
        %1047 = vmatpush1.msra.mxu0 0.0
        %1048 = vmatprep.subr.mxu0 0.0
        %1049 = vmatpush1.msra.mxu0 0.0
        %1050 = vmatprep.subr.mxu0 0.0
        %1051 = vmatpush1.msra.mxu0 0.0
        %1052 = vmatprep.subr.mxu0 0.0
        %1053 = vmatpush1.msra.mxu0 0.0
        %1054 = vmatprep.subr.mxu0 0.0
        %1055 = vmatpush1.msra.mxu0 0.0
        %1056 = vmatprep.subr.mxu0 0.0
        %1057 = vmatpush1.msra.mxu0 0.0
        %1058 = vmatprep.subr.mxu0 0.0
        %1059 = vmatpush1.msra.mxu0 0.0
        %1060 = vmatprep.subr.mxu0 0.0
        %1061 = vmatpush1.msra.mxu0 0.0
        %1062 = vmatprep.subr.mxu0 0.0
        %1063 = vmatpush1.msra.mxu0 0.0
        %1064 = vmatprep.subr.mxu0 0.0
        %1065 = vmatpush1.msra.mxu0 0.0
        %1066 = vmatprep.subr.mxu0 0.0
        %1067 = vmatpush1.msra.mxu0 0.0
        %1068 = vmatprep.subr.mxu0 0.0
        %1069 = vmatpush1.msra.mxu0 0.0
        %1070 = vmatprep.subr.mxu0 0.0
        %1071 = vmatpush1.msra.mxu0 0.0
        %1072 = vmatprep.subr.mxu0 0.0
        %1073 = vmatpush1.msra.mxu0 0.0
        %1074 = vmatprep.subr.mxu0 0.0
        %1075 = vmatpush1.msra.mxu0 0.0
        %1076 = vmatprep.subr.mxu0 0.0
        %1077 = vmatpush1.msra.mxu0 0.0
        %1078 = vmatprep.subr.mxu0 0.0
        %1079 = vmatpush1.msra.mxu0 0.0
        %1080 = vmatprep.subr.mxu0 0.0
        %1081 = vmatpush1.msra.mxu0 0.0
        %1082 = vmatprep.subr.mxu0 0.0
        %1083 = vmatpush1.msra.mxu0 0.0
        %1084 = vmatprep.subr.mxu0 0.0
        %1085 = vmatpush1.msra.mxu0 0.0
        %1086 = vmatprep.subr.mxu0 0.0
        %1087 = vmatpush1.msra.mxu0 0.0
        %1088 = vmatprep.subr.mxu0 0.0
        %1089 = vmatpush1.msra.mxu0 0.0
        %1090 = vmatprep.subr.mxu0 0.0
        %1091 = vmatpush1.msra.mxu0 0.0
        %1092 = vmatprep.mubr.f32.mxu0 0.0
        %1093 = vmatmul.mubr.f32.gmra.mrb[0].mxu0 %v1023
        %v1094 = vpop.f32.mrb[0].mxu0
        %v1095 = vadd.f32 0.0, %v1094
        %v1096 = vpop.f32.mrb[0].mxu0
        %1097 = vmatprep.mubr.f32.mxu0 0.0
        %1098 = vmatmul.mubr.f32.gmra.mrb[0].mxu0 %v1026
        %v1099 = vpop.f32.mrb[0].mxu0
        %v1100 = vadd.f32 0.0, %v1099
        %v1101 = vpop.f32.mrb[0].mxu0
        %1102 = vdwg.mxu0
        %v1103 = vsub.f32 %v931, %v1012
        %v1104 = vsub.f32 %v936, %v1017
        %v1105 = vsub.f32 %v1095, %v931
        %v1106 = vsub.f32 %v1100, %v936
        %v1107 = vsub.f32 %v1105, %v1012
        %v1108 = vsub.f32 %v1106, %v1017
        %v1109 = vld [vmem:[%s504] sm:$0xff]
        %v1110 = vld [vmem:[%s504 + $0x8] sm:$0xff]
        %v1111 = vld [vmem:[%s513] sm:$0xff]
        %v1112 = vld [vmem:[%s513 + $0x8] sm:$0xff]
        %v1113 = vld [vmem:[%s580] sm:$0xff]
        %v1114 = vld [vmem:[%s580 + $0x8] sm:$0xff]
        %v1115 = vmul.f32 %v1103, %v1109
        %v1116 = vmul.f32 %v1104, %v1110
        %v1117 = vmul.f32 %v1107, %v1111
        %v1118 = vmul.f32 %v1108, %v1112
        %v1119 = vsub.f32 %v1115, %v1117
        %v1120 = vsub.f32 %v1116, %v1118
        %v1121 = vadd.f32 %v1113, %v1119
        %v1122 = vadd.f32 %v1114, %v1120
        %1123 = vst.msk [vmem:[%s580] sm:$0xff] %vm600, %v1121
        %1124 = vst.msk [vmem:[%s580 + $0x8] sm:$0xff] %vm600, %v1122
        %s1125 = scalar_lea.vmem %s580, 16 [#allocation16]
        %v1126 = vld [vmem:[%s1125] sm:$0xff]
        %v1127 = vld [vmem:[%s1125 + $0x8] sm:$0xff]
        %v1128 = vmul.f32 %v1103, %v1111
        %v1129 = vmul.f32 %v1104, %v1112
        %v1130 = vmul.f32 %v1107, %v1109
        %v1131 = vmul.f32 %v1108, %v1110
        %v1132 = vadd.f32 %v1128, %v1130
        %v1133 = vadd.f32 %v1129, %v1131
        %v1134 = vadd.f32 %v1126, %v1132
        %v1135 = vadd.f32 %v1127, %v1133
        %1136 = vst.msk [vmem:[%s1125] sm:$0xff] %vm600, %v1134
        %1137 = vst.msk [vmem:[%s1125 + $0x8] sm:$0xff] %vm600, %v1135
        %s1138 = sand.u32 %s293, 1
        %s1139 = scalar_lea.sflag [#allocation4], %s1138
        %s1140 = sand.u32 %s293, 1
        %s1141 = smul.addr %s1140, 32
        %s1142 = scalar_lea.vmem [#allocation16], %s1141
        // Predicated region
        $region97: #{tpu_custom_call.1} parent=59 // pred_check
          %p1143 = pneg %p303
        $region98: #{tpu_custom_call.1} parent=59 // pred_check_branch
          %1145 = sbr.rel (%p1143) target = $region100
        $region99: #{tpu_custom_call.1} parent=59 // pred_region
          %s1147 = ssub.s32 512, 512
          %1148 = vsyncadd %s1139, %s1147
          %s1149 = smul.addr %s39, 4
          %s1150 = smul.addr %s1149, 128
          %s1151 = scalar_lea.hbm %s10, %s1150
          %s1152 = sshll.u32 %s1142, 4
          %s1153 = int_to_ptr.vmem [resolvable:$true] %s1152
          %1158 = dma.vmem_to_hbm [thread:$0]  %s1153, 512, %s1151, %s1139, 128, 128, 8
        $region100: #{tpu_custom_call.1} parent=59 // pred_fallthru
          _
      $region60: #{tpu_custom_call.1} parent=5 // pred_fallthru
        _
      %p1159 = scmp.le.s32.totalorder 2, %s30
      // Predicated region
      $region101: #{tpu_custom_call.1} parent=5 // pred_check
        %p1160 = pneg %p1159
      $region102: #{tpu_custom_call.1} parent=5 // pred_check_branch
        %1162 = sbr.rel (%p1160) target = $region104
      $region103: #{tpu_custom_call.1} parent=5 // pred_region
        %s1163 = ssub.s32 %s30, 2
        // Predicated region
        $region105: #{tpu_custom_call.1} parent=103 // pred_check
          %p1164 = pneg %p309
        $region106: #{tpu_custom_call.1} parent=103 // pred_check_branch
          %1166 = sbr.rel (%p1164) target = $region108
        $region107: #{tpu_custom_call.1} parent=103 // pred_region
          %s1167 = sand.u32 %s294, 1
          %s1168 = scalar_lea.sflag [#allocation4], %s1167
          %s1169 = sand.u32 %s294, 1
          %s1170 = smul.addr %s1169, 32
          %s1171 = scalar_lea.vmem [#allocation16], %s1170
          %1172 = dma.done %s1168, 512
        $region108: #{tpu_custom_call.1} parent=103 // pred_fallthru
          _
      $region104: #{tpu_custom_call.1} parent=5 // pred_fallthru
        _
    $region6: #{tpu_custom_call.1} parent=1 // loop_footer
      %s34 = sadd.s32 1, %s30
    $region7: #{tpu_custom_call.1} parent=1 // loop_footer_branch
      %29 = sbr.rel target = $region3
    $region8: #{tpu_custom_call.1} parent=1 // loop_exit
      _
    %1173 = vsyncpa [#allocation3], 1
    %s1174 = scalar_lea.sflag [#allocation3], 1
    %1175 = vsyncpa %s1174, 1
    %1176 = vsyncpa [#allocation6], 1
    %s1177 = scalar_lea.sflag [#allocation6], 1
    %1178 = vsyncpa %s1177, 1
    %1179 = vsyncpa [#allocation9], 1
    %s1180 = scalar_lea.sflag [#allocation9], 1
    %1181 = vsyncpa %s1180, 1
    %1182 = vsyncpa [#allocation12], 1
    %1183 = vsyncpa [#allocation15], 1
    %1184 = vsyncpa [#allocation4], 1
    %s1185 = scalar_lea.sflag [#allocation4], 1
    %1186 = vsyncpa %s1185, 1

</llo_original>
